<compile_context>
chip_gen: v7x
topology: tpu7x:2x2x1
jax: 0.10.0
libtpu: 0.0.40
codegen_flags: <defaults>
</compile_context>

<pallas_src>
import jax
import jax.numpy as jnp
from jax.experimental import pallas as pl
from jax.experimental.pallas import tpu as pltpu

HIDDEN = 128       # LSTM hidden size (nn.LSTM(input_dim, 128))
FC1 = 64           # fc1 output features
FC1_PAD = 128      # fc1 zero-padded to a full 128-lane slab (exact)
OUT_PAD = 128      # fc2 output zero-padded to 128 lanes, sliced in wrapper
B_PAD = 8          # batch padded to one full sublane tile

# Packed-head row layout (all starts 8-sublane aligned).
_W1_ROW = 0                    # rows [0,128): fc1.weight^T, zero-padded lanes
_W2_ROW = HIDDEN               # rows [128,256): fc2.weight^T, zero-padded
_B1_ROW = 2 * HIDDEN           # row 256: fc1.bias
_B2_ROW = 2 * HIDDEN + 8       # row 264: fc2.bias
_HEAD_ROWS = 2 * HIDDEN + 16   # 272 rows total


def _make_dqn_kernel(T):
    H = HIDDEN
    BP = B_PAD

    def kernel(x_ref, wih_ref, whh_ref, head_ref, out_ref):
        # Hoisted input projection: one (T*BP, D+1) @ (D+1, 4H) matmul for all
        # timesteps at once; the folded LSTM bias rides in via the trailing
        # ones column of x, so no separate bias add is needed.
        gates_x = jnp.dot(x_ref[...], wih_ref[...],
                          preferred_element_type=jnp.float32)       # (T*BP, 4H)

        h = jnp.zeros((BP, H), jnp.float32)
        c = jnp.zeros((BP, H), jnp.float32)

        # Straight-line, trace-time-unrolled recurrence (T small & static).
        # BP = 8 => every slice below starts at an 8-aligned sublane offset.
        for t in range(T):
            gates = gates_x[t * BP:(t + 1) * BP, :] + jnp.dot(
                h, whh_ref[...], preferred_element_type=jnp.float32)  # (BP, 4H)
            # Gate columns were permuted at init time to [i, f, o | g]:
            # one sigmoid over the contiguous 3H lanes, one tanh over the rest.
            sig = jax.nn.sigmoid(gates[:, :3 * H])
            g_g = jnp.tanh(gates[:, 3 * H:])
            i_g = sig[:, 0 * H:1 * H]
            f_g = sig[:, 1 * H:2 * H]
            o_g = sig[:, 2 * H:3 * H]
            c = f_g * c + i_g * g_g
            h = o_g * jnp.tanh(c)

        # Head on hn[-1] == final h: fc1 -> relu -> fc2, 128-lane dense,
        # weights/biases read from one packed VMEM slab (8-aligned rows).
        w1 = head_ref[_W1_ROW:_W1_ROW + H, :]
        w2 = head_ref[_W2_ROW:_W2_ROW + FC1_PAD, :]
        b1 = head_ref[_B1_ROW:_B1_ROW + 1, :]
        b2 = head_ref[_B2_ROW:_B2_ROW + 1, :]
        z = jnp.maximum(
            jnp.dot(h, w1, preferred_element_type=jnp.float32) + b1, 0.0)
        q = jnp.dot(z, w2, preferred_element_type=jnp.float32) + b2
        out_ref[...] = q.astype(out_ref.dtype)

    return kernel


def dqn_forward(x, params, out_dim):
    """x: (B, T, D) float32, batch_first like the PyTorch module."""
    B, T, D = x.shape
    wih_aug, whh_t, head = params
    assert B <= B_PAD, f"batch {B} > padded batch {B_PAD}"
    assert out_dim <= OUT_PAD, f"output_dim {out_dim} > padded {OUT_PAD}"
    assert wih_aug.shape[0] == D + 1, "params built for a different input_dim"

    # Time-major, batch padded to a full 8-sublane tile, plus a ones column
    # that carries the folded LSTM bias through the hoisted input projection.
    x_tm = jnp.transpose(x, (1, 0, 2))                              # (T, B, D)
    x_pad = jnp.zeros((T, B_PAD, D), jnp.float32).at[:, :B, :].set(x_tm)
    ones = jnp.ones((T, B_PAD, 1), jnp.float32)
    x_aug = jnp.concatenate([x_pad, ones], axis=-1).reshape(T * B_PAD, D + 1)

    H4 = 4 * HIDDEN
    flops = int(2 * T * B_PAD * (D + 1) * H4          # input projection
                + T * 2 * B_PAD * HIDDEN * H4          # recurrence h @ W_hh
                + 2 * B_PAD * HIDDEN * FC1_PAD         # fc1
                + 2 * B_PAD * FC1_PAD * OUT_PAD)       # fc2
    transcendentals = int(T * B_PAD * (H4 + HIDDEN))   # sigmoid/tanh per step
    bytes_accessed = int(4 * (x_aug.size + wih_aug.size + whh_t.size
                              + head.size + B_PAD * OUT_PAD))

    vmem = pl.BlockSpec(memory_space=pltpu.MemorySpace.VMEM)
    out_padded = pl.pallas_call(
        _make_dqn_kernel(T),
        out_shape=jax.ShapeDtypeStruct((B_PAD, OUT_PAD), jnp.float32),
        in_specs=[vmem, vmem, vmem, vmem],
        out_specs=vmem,
        cost_estimate=pl.CostEstimate(flops=flops,
                                      transcendentals=transcendentals,
                                      bytes_accessed=bytes_accessed),
    )(x_aug, wih_aug, whh_t, head)

    return out_padded[:B, :out_dim]


def init_dqn_params(key, input_dim, output_dim):
    """Deterministic init mirroring PyTorch default U(-k, k) ranges."""
    assert output_dim <= OUT_PAD, "fc2 output is zero-padded to 128 lanes"
    assert FC1 <= FC1_PAD, "fc1 is zero-padded to 128 lanes"

    ks = jax.random.split(key, 8)
    H = HIDDEN
    k_lstm = 1.0 / jnp.sqrt(H)
    k_fc1 = 1.0 / jnp.sqrt(H)
    k_fc2 = 1.0 / jnp.sqrt(FC1)

    def u(k, shape, bound):
        return jax.random.uniform(k, shape, jnp.float32, -bound, bound)

    w_ih = u(ks[0], (4 * H, input_dim), k_lstm)   # PyTorch weight_ih_l0 [i,f,g,o]
    w_hh = u(ks[1], (4 * H, H), k_lstm)           # PyTorch weight_hh_l0
    b_ih = u(ks[2], (4 * H,), k_lstm)
    b_hh = u(ks[3], (4 * H,), k_lstm)
    w1 = u(ks[4], (FC1, H), k_fc1)                # fc1.weight
    b1 = u(ks[5], (FC1,), k_fc1)
    w2 = u(ks[6], (output_dim, FC1), k_fc2)       # fc2.weight
    b2 = u(ks[7], (output_dim,), k_fc2)

    # Permute gate columns from PyTorch [i, f, g, o] to [i, f, o, g] so the
    # kernel applies one sigmoid over the first 3H lanes and one tanh over
    # the last H lanes (numerically exact reordering).
    perm = jnp.concatenate([jnp.arange(0, 2 * H),
                            jnp.arange(3 * H, 4 * H),
                            jnp.arange(2 * H, 3 * H)])
    wih_p = jnp.transpose(w_ih)[:, perm]                       # (D, 4H)
    whh_p = jnp.transpose(w_hh)[:, perm]                       # (H, 4H)
    bias_p = (b_ih + b_hh)[perm].reshape(1, 4 * H)             # (1, 4H)

    # Fold the LSTM bias into the input projection (trailing ones column of x).
    wih_aug = jnp.concatenate([wih_p, bias_p], axis=0)         # (D+1, 4H)

    # Pack the whole head into one VMEM slab with 8-aligned row offsets.
    # Padding is numerically exact: padded fc1 units give relu(0)=0, padded
    # fc2 lanes are sliced away in the wrapper.
    head = jnp.zeros((_HEAD_ROWS, OUT_PAD), jnp.float32)
    head = head.at[_W1_ROW:_W1_ROW + H, :FC1].set(jnp.transpose(w1))
    head = head.at[_W2_ROW:_W2_ROW + FC1, :output_dim].set(jnp.transpose(w2))
    head = head.at[_B1_ROW, :FC1].set(b1)
    head = head.at[_B2_ROW, :output_dim].set(b2)

    return wih_aug, whh_p, head


if __name__ == "__main__":
    B, T, INPUT_DIM, OUTPUT_DIM = 2, 8, 16, 4

    key = jax.random.PRNGKey(0)
    k_x, k_p = jax.random.split(key)
    x = jax.random.normal(k_x, (B, T, INPUT_DIM), dtype=jnp.float32)
    params = init_dqn_params(k_p, INPUT_DIM, OUTPUT_DIM)

    out = dqn_forward(x, params, OUTPUT_DIM)
    jax.block_until_ready(out)
    assert out.shape == (B, OUTPUT_DIM) and out.dtype == jnp.float32
    print("KERNEL_OK")
</pallas_src>

<mosaic_0001>
module attributes {stable_mosaic.version = 11 : i64} {
  func.func @kernel(%arg0: memref<64x17xf32, #tpu.memory_space<vmem>>, %arg1: memref<17x512xf32, #tpu.memory_space<vmem>>, %arg2: memref<128x512xf32, #tpu.memory_space<vmem>>, %arg3: memref<272x128xf32, #tpu.memory_space<vmem>>, %arg4: memref<8x128xf32, #tpu.memory_space<vmem>>) attributes {dimension_semantics = [], scalar_prefetch = 0 : i64, scratch_operands = 0 : i64, tpu.core_type = #tpu.core_type<tc>} {
    %c0 = arith.constant 0 : index
    %c0_0 = arith.constant 0 : index
    %0 = vector.load %arg0[%c0, %c0_0] : memref<64x17xf32, #tpu.memory_space<vmem>>, vector<64x17xf32>
    %c0_1 = arith.constant 0 : index
    %c0_2 = arith.constant 0 : index
    %1 = vector.load %arg1[%c0_1, %c0_2] : memref<17x512xf32, #tpu.memory_space<vmem>>, vector<17x512xf32>
    %cst = arith.constant dense<0.000000e+00> : vector<64x512xf32>
    %2 = tpu.matmul %0, %1, %cst {dimension_numbers = #tpu.dot_dimension_numbers<[1], [0], [0], [1], [0, 0, 1, 1], [], []>} : vector<64x17xf32>, vector<17x512xf32>, vector<64x512xf32> -> vector<64x512xf32>
    %cst_3 = arith.constant 0.000000e+00 : f32
    %3 = vector.broadcast %cst_3 : f32 to vector<8x128xf32>
    %cst_4 = arith.constant 0.000000e+00 : f32
    %4 = vector.broadcast %cst_4 : f32 to vector<8x128xf32>
    %5 = vector.extract_strided_slice %2 {offsets = [0, 0], sizes = [8, 512], strides = [1, 1]} : vector<64x512xf32> to vector<8x512xf32>
    %c0_5 = arith.constant 0 : index
    %c0_6 = arith.constant 0 : index
    %6 = vector.load %arg2[%c0_5, %c0_6] : memref<128x512xf32, #tpu.memory_space<vmem>>, vector<128x512xf32>
    %cst_7 = arith.constant dense<0.000000e+00> : vector<8x512xf32>
    %7 = tpu.matmul %3, %6, %cst_7 {dimension_numbers = #tpu.dot_dimension_numbers<[1], [0], [0], [1], [0, 0, 1, 1], [], []>} : vector<8x128xf32>, vector<128x512xf32>, vector<8x512xf32> -> vector<8x512xf32>
    %8 = arith.addf %5, %7 : vector<8x512xf32>
    %9 = vector.extract_strided_slice %8 {offsets = [0, 0], sizes = [8, 384], strides = [1, 1]} : vector<8x512xf32> to vector<8x384xf32>
    %10 = arith.negf %9 : vector<8x384xf32>
    %11 = math.exp %10 : vector<8x384xf32>
    %cst_8 = arith.constant 1.000000e+00 : f32
    %12 = vector.broadcast %cst_8 : f32 to vector<8x384xf32>
    %13 = arith.addf %12, %11 : vector<8x384xf32>
    %14 = arith.divf %12, %13 : vector<8x384xf32>
    %15 = vector.extract_strided_slice %8 {offsets = [0, 384], sizes = [8, 128], strides = [1, 1]} : vector<8x512xf32> to vector<8x128xf32>
    %16 = math.tanh %15 : vector<8x128xf32>
    %17 = vector.extract_strided_slice %14 {offsets = [0, 0], sizes = [8, 128], strides = [1, 1]} : vector<8x384xf32> to vector<8x128xf32>
    %18 = vector.extract_strided_slice %14 {offsets = [0, 128], sizes = [8, 128], strides = [1, 1]} : vector<8x384xf32> to vector<8x128xf32>
    %19 = vector.extract_strided_slice %14 {offsets = [0, 256], sizes = [8, 128], strides = [1, 1]} : vector<8x384xf32> to vector<8x128xf32>
    %20 = arith.mulf %18, %4 : vector<8x128xf32>
    %21 = arith.mulf %17, %16 : vector<8x128xf32>
    %22 = arith.addf %20, %21 : vector<8x128xf32>
    %23 = math.tanh %22 : vector<8x128xf32>
    %24 = arith.mulf %19, %23 : vector<8x128xf32>
    %25 = vector.extract_strided_slice %2 {offsets = [8, 0], sizes = [8, 512], strides = [1, 1]} : vector<64x512xf32> to vector<8x512xf32>
    %c0_9 = arith.constant 0 : index
    %c0_10 = arith.constant 0 : index
    %26 = vector.load %arg2[%c0_9, %c0_10] : memref<128x512xf32, #tpu.memory_space<vmem>>, vector<128x512xf32>
    %cst_11 = arith.constant dense<0.000000e+00> : vector<8x512xf32>
    %27 = tpu.matmul %24, %26, %cst_11 {dimension_numbers = #tpu.dot_dimension_numbers<[1], [0], [0], [1], [0, 0, 1, 1], [], []>} : vector<8x128xf32>, vector<128x512xf32>, vector<8x512xf32> -> vector<8x512xf32>
    %28 = arith.addf %25, %27 : vector<8x512xf32>
    %29 = vector.extract_strided_slice %28 {offsets = [0, 0], sizes = [8, 384], strides = [1, 1]} : vector<8x512xf32> to vector<8x384xf32>
    %30 = arith.negf %29 : vector<8x384xf32>
    %31 = math.exp %30 : vector<8x384xf32>
    %cst_12 = arith.constant 1.000000e+00 : f32
    %32 = vector.broadcast %cst_12 : f32 to vector<8x384xf32>
    %33 = arith.addf %32, %31 : vector<8x384xf32>
    %34 = arith.divf %32, %33 : vector<8x384xf32>
    %35 = vector.extract_strided_slice %28 {offsets = [0, 384], sizes = [8, 128], strides = [1, 1]} : vector<8x512xf32> to vector<8x128xf32>
    %36 = math.tanh %35 : vector<8x128xf32>
    %37 = vector.extract_strided_slice %34 {offsets = [0, 0], sizes = [8, 128], strides = [1, 1]} : vector<8x384xf32> to vector<8x128xf32>
    %38 = vector.extract_strided_slice %34 {offsets = [0, 128], sizes = [8, 128], strides = [1, 1]} : vector<8x384xf32> to vector<8x128xf32>
    %39 = vector.extract_strided_slice %34 {offsets = [0, 256], sizes = [8, 128], strides = [1, 1]} : vector<8x384xf32> to vector<8x128xf32>
    %40 = arith.mulf %38, %22 : vector<8x128xf32>
    %41 = arith.mulf %37, %36 : vector<8x128xf32>
    %42 = arith.addf %40, %41 : vector<8x128xf32>
    %43 = math.tanh %42 : vector<8x128xf32>
    %44 = arith.mulf %39, %43 : vector<8x128xf32>
    %45 = vector.extract_strided_slice %2 {offsets = [16, 0], sizes = [8, 512], strides = [1, 1]} : vector<64x512xf32> to vector<8x512xf32>
    %c0_13 = arith.constant 0 : index
    %c0_14 = arith.constant 0 : index
    %46 = vector.load %arg2[%c0_13, %c0_14] : memref<128x512xf32, #tpu.memory_space<vmem>>, vector<128x512xf32>
    %cst_15 = arith.constant dense<0.000000e+00> : vector<8x512xf32>
    %47 = tpu.matmul %44, %46, %cst_15 {dimension_numbers = #tpu.dot_dimension_numbers<[1], [0], [0], [1], [0, 0, 1, 1], [], []>} : vector<8x128xf32>, vector<128x512xf32>, vector<8x512xf32> -> vector<8x512xf32>
    %48 = arith.addf %45, %47 : vector<8x512xf32>
    %49 = vector.extract_strided_slice %48 {offsets = [0, 0], sizes = [8, 384], strides = [1, 1]} : vector<8x512xf32> to vector<8x384xf32>
    %50 = arith.negf %49 : vector<8x384xf32>
    %51 = math.exp %50 : vector<8x384xf32>
    %cst_16 = arith.constant 1.000000e+00 : f32
    %52 = vector.broadcast %cst_16 : f32 to vector<8x384xf32>
    %53 = arith.addf %52, %51 : vector<8x384xf32>
    %54 = arith.divf %52, %53 : vector<8x384xf32>
    %55 = vector.extract_strided_slice %48 {offsets = [0, 384], sizes = [8, 128], strides = [1, 1]} : vector<8x512xf32> to vector<8x128xf32>
    %56 = math.tanh %55 : vector<8x128xf32>
    %57 = vector.extract_strided_slice %54 {offsets = [0, 0], sizes = [8, 128], strides = [1, 1]} : vector<8x384xf32> to vector<8x128xf32>
    %58 = vector.extract_strided_slice %54 {offsets = [0, 128], sizes = [8, 128], strides = [1, 1]} : vector<8x384xf32> to vector<8x128xf32>
    %59 = vector.extract_strided_slice %54 {offsets = [0, 256], sizes = [8, 128], strides = [1, 1]} : vector<8x384xf32> to vector<8x128xf32>
    %60 = arith.mulf %58, %42 : vector<8x128xf32>
    %61 = arith.mulf %57, %56 : vector<8x128xf32>
    %62 = arith.addf %60, %61 : vector<8x128xf32>
    %63 = math.tanh %62 : vector<8x128xf32>
    %64 = arith.mulf %59, %63 : vector<8x128xf32>
    %65 = vector.extract_strided_slice %2 {offsets = [24, 0], sizes = [8, 512], strides = [1, 1]} : vector<64x512xf32> to vector<8x512xf32>
    %c0_17 = arith.constant 0 : index
    %c0_18 = arith.constant 0 : index
    %66 = vector.load %arg2[%c0_17, %c0_18] : memref<128x512xf32, #tpu.memory_space<vmem>>, vector<128x512xf32>
    %cst_19 = arith.constant dense<0.000000e+00> : vector<8x512xf32>
    %67 = tpu.matmul %64, %66, %cst_19 {dimension_numbers = #tpu.dot_dimension_numbers<[1], [0], [0], [1], [0, 0, 1, 1], [], []>} : vector<8x128xf32>, vector<128x512xf32>, vector<8x512xf32> -> vector<8x512xf32>
    %68 = arith.addf %65, %67 : vector<8x512xf32>
    %69 = vector.extract_strided_slice %68 {offsets = [0, 0], sizes = [8, 384], strides = [1, 1]} : vector<8x512xf32> to vector<8x384xf32>
    %70 = arith.negf %69 : vector<8x384xf32>
    %71 = math.exp %70 : vector<8x384xf32>
    %cst_20 = arith.constant 1.000000e+00 : f32
    %72 = vector.broadcast %cst_20 : f32 to vector<8x384xf32>
    %73 = arith.addf %72, %71 : vector<8x384xf32>
    %74 = arith.divf %72, %73 : vector<8x384xf32>
    %75 = vector.extract_strided_slice %68 {offsets = [0, 384], sizes = [8, 128], strides = [1, 1]} : vector<8x512xf32> to vector<8x128xf32>
    %76 = math.tanh %75 : vector<8x128xf32>
    %77 = vector.extract_strided_slice %74 {offsets = [0, 0], sizes = [8, 128], strides = [1, 1]} : vector<8x384xf32> to vector<8x128xf32>
    %78 = vector.extract_strided_slice %74 {offsets = [0, 128], sizes = [8, 128], strides = [1, 1]} : vector<8x384xf32> to vector<8x128xf32>
    %79 = vector.extract_strided_slice %74 {offsets = [0, 256], sizes = [8, 128], strides = [1, 1]} : vector<8x384xf32> to vector<8x128xf32>
    %80 = arith.mulf %78, %62 : vector<8x128xf32>
    %81 = arith.mulf %77, %76 : vector<8x128xf32>
    %82 = arith.addf %80, %81 : vector<8x128xf32>
    %83 = math.tanh %82 : vector<8x128xf32>
    %84 = arith.mulf %79, %83 : vector<8x128xf32>
    %85 = vector.extract_strided_slice %2 {offsets = [32, 0], sizes = [8, 512], strides = [1, 1]} : vector<64x512xf32> to vector<8x512xf32>
    %c0_21 = arith.constant 0 : index
    %c0_22 = arith.constant 0 : index
    %86 = vector.load %arg2[%c0_21, %c0_22] : memref<128x512xf32, #tpu.memory_space<vmem>>, vector<128x512xf32>
    %cst_23 = arith.constant dense<0.000000e+00> : vector<8x512xf32>
    %87 = tpu.matmul %84, %86, %cst_23 {dimension_numbers = #tpu.dot_dimension_numbers<[1], [0], [0], [1], [0, 0, 1, 1], [], []>} : vector<8x128xf32>, vector<128x512xf32>, vector<8x512xf32> -> vector<8x512xf32>
    %88 = arith.addf %85, %87 : vector<8x512xf32>
    %89 = vector.extract_strided_slice %88 {offsets = [0, 0], sizes = [8, 384], strides = [1, 1]} : vector<8x512xf32> to vector<8x384xf32>
    %90 = arith.negf %89 : vector<8x384xf32>
    %91 = math.exp %90 : vector<8x384xf32>
    %cst_24 = arith.constant 1.000000e+00 : f32
    %92 = vector.broadcast %cst_24 : f32 to vector<8x384xf32>
    %93 = arith.addf %92, %91 : vector<8x384xf32>
    %94 = arith.divf %92, %93 : vector<8x384xf32>
    %95 = vector.extract_strided_slice %88 {offsets = [0, 384], sizes = [8, 128], strides = [1, 1]} : vector<8x512xf32> to vector<8x128xf32>
    %96 = math.tanh %95 : vector<8x128xf32>
    %97 = vector.extract_strided_slice %94 {offsets = [0, 0], sizes = [8, 128], strides = [1, 1]} : vector<8x384xf32> to vector<8x128xf32>
    %98 = vector.extract_strided_slice %94 {offsets = [0, 128], sizes = [8, 128], strides = [1, 1]} : vector<8x384xf32> to vector<8x128xf32>
    %99 = vector.extract_strided_slice %94 {offsets = [0, 256], sizes = [8, 128], strides = [1, 1]} : vector<8x384xf32> to vector<8x128xf32>
    %100 = arith.mulf %98, %82 : vector<8x128xf32>
    %101 = arith.mulf %97, %96 : vector<8x128xf32>
    %102 = arith.addf %100, %101 : vector<8x128xf32>
    %103 = math.tanh %102 : vector<8x128xf32>
    %104 = arith.mulf %99, %103 : vector<8x128xf32>
    %105 = vector.extract_strided_slice %2 {offsets = [40, 0], sizes = [8, 512], strides = [1, 1]} : vector<64x512xf32> to vector<8x512xf32>
    %c0_25 = arith.constant 0 : index
    %c0_26 = arith.constant 0 : index
    %106 = vector.load %arg2[%c0_25, %c0_26] : memref<128x512xf32, #tpu.memory_space<vmem>>, vector<128x512xf32>
    %cst_27 = arith.constant dense<0.000000e+00> : vector<8x512xf32>
    %107 = tpu.matmul %104, %106, %cst_27 {dimension_numbers = #tpu.dot_dimension_numbers<[1], [0], [0], [1], [0, 0, 1, 1], [], []>} : vector<8x128xf32>, vector<128x512xf32>, vector<8x512xf32> -> vector<8x512xf32>
    %108 = arith.addf %105, %107 : vector<8x512xf32>
    %109 = vector.extract_strided_slice %108 {offsets = [0, 0], sizes = [8, 384], strides = [1, 1]} : vector<8x512xf32> to vector<8x384xf32>
    %110 = arith.negf %109 : vector<8x384xf32>
    %111 = math.exp %110 : vector<8x384xf32>
    %cst_28 = arith.constant 1.000000e+00 : f32
    %112 = vector.broadcast %cst_28 : f32 to vector<8x384xf32>
    %113 = arith.addf %112, %111 : vector<8x384xf32>
    %114 = arith.divf %112, %113 : vector<8x384xf32>
    %115 = vector.extract_strided_slice %108 {offsets = [0, 384], sizes = [8, 128], strides = [1, 1]} : vector<8x512xf32> to vector<8x128xf32>
    %116 = math.tanh %115 : vector<8x128xf32>
    %117 = vector.extract_strided_slice %114 {offsets = [0, 0], sizes = [8, 128], strides = [1, 1]} : vector<8x384xf32> to vector<8x128xf32>
    %118 = vector.extract_strided_slice %114 {offsets = [0, 128], sizes = [8, 128], strides = [1, 1]} : vector<8x384xf32> to vector<8x128xf32>
    %119 = vector.extract_strided_slice %114 {offsets = [0, 256], sizes = [8, 128], strides = [1, 1]} : vector<8x384xf32> to vector<8x128xf32>
    %120 = arith.mulf %118, %102 : vector<8x128xf32>
    %121 = arith.mulf %117, %116 : vector<8x128xf32>
    %122 = arith.addf %120, %121 : vector<8x128xf32>
    %123 = math.tanh %122 : vector<8x128xf32>
    %124 = arith.mulf %119, %123 : vector<8x128xf32>
    %125 = vector.extract_strided_slice %2 {offsets = [48, 0], sizes = [8, 512], strides = [1, 1]} : vector<64x512xf32> to vector<8x512xf32>
    %c0_29 = arith.constant 0 : index
    %c0_30 = arith.constant 0 : index
    %126 = vector.load %arg2[%c0_29, %c0_30] : memref<128x512xf32, #tpu.memory_space<vmem>>, vector<128x512xf32>
    %cst_31 = arith.constant dense<0.000000e+00> : vector<8x512xf32>
    %127 = tpu.matmul %124, %126, %cst_31 {dimension_numbers = #tpu.dot_dimension_numbers<[1], [0], [0], [1], [0, 0, 1, 1], [], []>} : vector<8x128xf32>, vector<128x512xf32>, vector<8x512xf32> -> vector<8x512xf32>
    %128 = arith.addf %125, %127 : vector<8x512xf32>
    %129 = vector.extract_strided_slice %128 {offsets = [0, 0], sizes = [8, 384], strides = [1, 1]} : vector<8x512xf32> to vector<8x384xf32>
    %130 = arith.negf %129 : vector<8x384xf32>
    %131 = math.exp %130 : vector<8x384xf32>
    %cst_32 = arith.constant 1.000000e+00 : f32
    %132 = vector.broadcast %cst_32 : f32 to vector<8x384xf32>
    %133 = arith.addf %132, %131 : vector<8x384xf32>
    %134 = arith.divf %132, %133 : vector<8x384xf32>
    %135 = vector.extract_strided_slice %128 {offsets = [0, 384], sizes = [8, 128], strides = [1, 1]} : vector<8x512xf32> to vector<8x128xf32>
    %136 = math.tanh %135 : vector<8x128xf32>
    %137 = vector.extract_strided_slice %134 {offsets = [0, 0], sizes = [8, 128], strides = [1, 1]} : vector<8x384xf32> to vector<8x128xf32>
    %138 = vector.extract_strided_slice %134 {offsets = [0, 128], sizes = [8, 128], strides = [1, 1]} : vector<8x384xf32> to vector<8x128xf32>
    %139 = vector.extract_strided_slice %134 {offsets = [0, 256], sizes = [8, 128], strides = [1, 1]} : vector<8x384xf32> to vector<8x128xf32>
    %140 = arith.mulf %138, %122 : vector<8x128xf32>
    %141 = arith.mulf %137, %136 : vector<8x128xf32>
    %142 = arith.addf %140, %141 : vector<8x128xf32>
    %143 = math.tanh %142 : vector<8x128xf32>
    %144 = arith.mulf %139, %143 : vector<8x128xf32>
    %145 = vector.extract_strided_slice %2 {offsets = [56, 0], sizes = [8, 512], strides = [1, 1]} : vector<64x512xf32> to vector<8x512xf32>
    %c0_33 = arith.constant 0 : index
    %c0_34 = arith.constant 0 : index
    %146 = vector.load %arg2[%c0_33, %c0_34] : memref<128x512xf32, #tpu.memory_space<vmem>>, vector<128x512xf32>
    %cst_35 = arith.constant dense<0.000000e+00> : vector<8x512xf32>
    %147 = tpu.matmul %144, %146, %cst_35 {dimension_numbers = #tpu.dot_dimension_numbers<[1], [0], [0], [1], [0, 0, 1, 1], [], []>} : vector<8x128xf32>, vector<128x512xf32>, vector<8x512xf32> -> vector<8x512xf32>
    %148 = arith.addf %145, %147 : vector<8x512xf32>
    %149 = vector.extract_strided_slice %148 {offsets = [0, 0], sizes = [8, 384], strides = [1, 1]} : vector<8x512xf32> to vector<8x384xf32>
    %150 = arith.negf %149 : vector<8x384xf32>
    %151 = math.exp %150 : vector<8x384xf32>
    %cst_36 = arith.constant 1.000000e+00 : f32
    %152 = vector.broadcast %cst_36 : f32 to vector<8x384xf32>
    %153 = arith.addf %152, %151 : vector<8x384xf32>
    %154 = arith.divf %152, %153 : vector<8x384xf32>
    %155 = vector.extract_strided_slice %148 {offsets = [0, 384], sizes = [8, 128], strides = [1, 1]} : vector<8x512xf32> to vector<8x128xf32>
    %156 = math.tanh %155 : vector<8x128xf32>
    %157 = vector.extract_strided_slice %154 {offsets = [0, 0], sizes = [8, 128], strides = [1, 1]} : vector<8x384xf32> to vector<8x128xf32>
    %158 = vector.extract_strided_slice %154 {offsets = [0, 128], sizes = [8, 128], strides = [1, 1]} : vector<8x384xf32> to vector<8x128xf32>
    %159 = vector.extract_strided_slice %154 {offsets = [0, 256], sizes = [8, 128], strides = [1, 1]} : vector<8x384xf32> to vector<8x128xf32>
    %160 = arith.mulf %158, %142 : vector<8x128xf32>
    %161 = arith.mulf %157, %156 : vector<8x128xf32>
    %162 = arith.addf %160, %161 : vector<8x128xf32>
    %163 = math.tanh %162 : vector<8x128xf32>
    %164 = arith.mulf %159, %163 : vector<8x128xf32>
    %c0_37 = arith.constant 0 : index
    %c0_38 = arith.constant 0 : index
    %165 = vector.load %arg3[%c0_37, %c0_38] : memref<272x128xf32, #tpu.memory_space<vmem>>, vector<128x128xf32>
    %c128 = arith.constant 128 : index
    %c0_39 = arith.constant 0 : index
    %166 = vector.load %arg3[%c128, %c0_39] : memref<272x128xf32, #tpu.memory_space<vmem>>, vector<128x128xf32>
    %c256 = arith.constant 256 : index
    %c0_40 = arith.constant 0 : index
    %167 = vector.load %arg3[%c256, %c0_40] : memref<272x128xf32, #tpu.memory_space<vmem>>, vector<1x128xf32>
    %c264 = arith.constant 264 : index
    %c0_41 = arith.constant 0 : index
    %168 = vector.load %arg3[%c264, %c0_41] : memref<272x128xf32, #tpu.memory_space<vmem>>, vector<1x128xf32>
    %cst_42 = arith.constant dense<0.000000e+00> : vector<8x128xf32>
    %169 = tpu.matmul %164, %165, %cst_42 {dimension_numbers = #tpu.dot_dimension_numbers<[1], [0], [0], [1], [0, 0, 1, 1], [], []>} : vector<8x128xf32>, vector<128x128xf32>, vector<8x128xf32> -> vector<8x128xf32>
    %170 = vector.broadcast %167 : vector<1x128xf32> to vector<8x128xf32>
    %171 = arith.addf %169, %170 : vector<8x128xf32>
    %cst_43 = arith.constant 0.000000e+00 : f32
    %172 = vector.broadcast %cst_43 : f32 to vector<8x128xf32>
    %173 = arith.maximumf %171, %172 : vector<8x128xf32>
    %cst_44 = arith.constant dense<0.000000e+00> : vector<8x128xf32>
    %174 = tpu.matmul %173, %166, %cst_44 {dimension_numbers = #tpu.dot_dimension_numbers<[1], [0], [0], [1], [0, 0, 1, 1], [], []>} : vector<8x128xf32>, vector<128x128xf32>, vector<8x128xf32> -> vector<8x128xf32>
    %175 = vector.broadcast %168 : vector<1x128xf32> to vector<8x128xf32>
    %176 = arith.addf %174, %175 : vector<8x128xf32>
    %c0_45 = arith.constant 0 : index
    %c0_46 = arith.constant 0 : index
    %177 = vector.load %arg4[%c0_45, %c0_46] : memref<8x128xf32, #tpu.memory_space<vmem>>, vector<8x128xf32>
    tpu.vector_store %arg4[%c0_45, %c0_46], %176 {strides = array<i32>} : memref<8x128xf32, #tpu.memory_space<vmem>>, vector<8x128xf32>,
    return
  }
}

</mosaic_0001>

<llo_original>
// kernel: tpu_custom_call.1
$region0: #{tpu_custom_call.1}
  #allocation0 [shape = 'u32[]', space=smem, size = 0x4, offset = 0x4, fixed_abs, tag = 'smem constant byte address 0x4 - core index']
  #allocation1 [shape = 'u32[144,128]{1,0:T(1,128)}', space=vmem, size = 0x12000, scoped, tag = 'internal scratch']
  %s0 = inlined_call_operand.vmem [shape: f32[64,17], index: 0, kind: input, shape index: {}]
  %s1 = inlined_call_operand.hbm [shape: f32[17,512], index: 1, kind: input, shape index: {}]
  %s2 = inlined_call_operand.hbm [shape: f32[128,512], index: 2, kind: input, shape index: {}]
  %s3 = inlined_call_operand.hbm [shape: f32[272,128], index: 3, kind: input, shape index: {}]
  %s4 = inlined_call_operand.hbm [shape: f32[8,128], index: 4, kind: output, shape index: {}]
  %s5 = sld [smem:[#allocation0]]
  $region38: #{tpu_custom_call.1} parent=0
    _
  %s7 = ssub.s32 1, %s5
  %s8 = scalar_select 0, %s7, %s5
  $region1: #{tpu_custom_call.1} parent=0
    #allocation2 [shape = 'u8[49152]{0}', space=vmem, size = 0xc000, scoped, tag = 'input window, operand 1, single buffered']
    #allocation3 [shape = 's32[1]{0}', space=sflag, size = 0x4, scoped, tag = 'scoped memory for tpu_custom_call.1']
    #allocation4 [shape = 's32[1]{0}', space=sflag, size = 0x4, scoped, tag = 'scoped memory for tpu_custom_call.1']
    #allocation5 [shape = 'u8[262144]{0}', space=vmem, size = 0x40000, scoped, tag = 'input window, operand 2, single buffered']
    #allocation6 [shape = 's32[1]{0}', space=sflag, size = 0x4, scoped, tag = 'scoped memory for tpu_custom_call.1']
    #allocation7 [shape = 'u8[139264]{0}', space=vmem, size = 0x22000, scoped, tag = 'input window, operand 3, single buffered']
    #allocation8 [shape = 'u8[4096]{0}', space=vmem, size = 0x1000, scoped, tag = 'output window, operand 0, single buffered']
    %9 = vsyncpa [#allocation3], 0
    %10 = vsyncpa [#allocation6], 0
    %11 = vsyncpa [#allocation4], 0
    // Predicated region
    $region2: #{tpu_custom_call.1} parent=1 // pred_check
      _
    $region3: #{tpu_custom_call.1} parent=1 // pred_check_branch
      %13 = sbr.rel (0) target = $region5
    $region4: #{tpu_custom_call.1} parent=1 // pred_region
      _
    $region5: #{tpu_custom_call.1} parent=1 // pred_fallthru
      _
    // Predicated region
    $region6: #{tpu_custom_call.1} parent=1 // pred_check
      _
    $region7: #{tpu_custom_call.1} parent=1 // pred_check_branch
      %15 = sbr.rel (0) target = $region9
    $region8: #{tpu_custom_call.1} parent=1 // pred_region
      %s17 = ssub.s32 1536, 1536
      %18 = vsyncadd [#allocation3], %s17
      %s19 = sshll.u32 [#allocation2], 4
      %s20 = int_to_ptr.vmem [resolvable:$true] %s19
      %25 = dma.hbm_to_vmem [thread:$0]  %s1, 1536, %s20, [#allocation3], 512, 512, 32
    $region9: #{tpu_custom_call.1} parent=1 // pred_fallthru
      _
    // Predicated region
    $region10: #{tpu_custom_call.1} parent=1 // pred_check
      _
    $region11: #{tpu_custom_call.1} parent=1 // pred_check_branch
      %27 = sbr.rel (0) target = $region13
    $region12: #{tpu_custom_call.1} parent=1 // pred_region
      %s29 = ssub.s32 8192, 8192
      %30 = vsyncadd [#allocation6], %s29
      %s31 = sshll.u32 [#allocation5], 4
      %s32 = int_to_ptr.vmem [resolvable:$true] %s31
      %37 = dma.hbm_to_vmem [thread:$0]  %s2, 8192, %s32, [#allocation6], 512, 512, 32
    $region13: #{tpu_custom_call.1} parent=1 // pred_fallthru
      _
    // Predicated region
    $region14: #{tpu_custom_call.1} parent=1 // pred_check
      _
    $region15: #{tpu_custom_call.1} parent=1 // pred_check_branch
      %39 = sbr.rel (0) target = $region17
    $region16: #{tpu_custom_call.1} parent=1 // pred_region
      %s41 = ssub.s32 4352, 4352
      %42 = vsyncadd [#allocation6], %s41
      %s43 = sshll.u32 [#allocation7], 4
      %s44 = int_to_ptr.vmem [resolvable:$true] %s43
      %49 = dma.hbm_to_vmem [thread:$0]  %s3, 4352, %s44, [#allocation6], 128, 128, 8
    $region17: #{tpu_custom_call.1} parent=1 // pred_fallthru
      _
    // Predicated region
    $region18: #{tpu_custom_call.1} parent=1 // pred_check
      _
    $region19: #{tpu_custom_call.1} parent=1 // pred_check_branch
      %51 = sbr.rel (0) target = $region21
    $region20: #{tpu_custom_call.1} parent=1 // pred_region
      %52 = dma.done [#allocation3], 1536
    $region21: #{tpu_custom_call.1} parent=1 // pred_fallthru
      _
    // Predicated region
    $region22: #{tpu_custom_call.1} parent=1 // pred_check
      _
    $region23: #{tpu_custom_call.1} parent=1 // pred_check_branch
      %54 = sbr.rel (0) target = $region25
    $region24: #{tpu_custom_call.1} parent=1 // pred_region
      %55 = dma.done [#allocation6], 8192
    $region25: #{tpu_custom_call.1} parent=1 // pred_fallthru
      _
    // Predicated region
    $region26: #{tpu_custom_call.1} parent=1 // pred_check
      _
    $region27: #{tpu_custom_call.1} parent=1 // pred_check_branch
      %57 = sbr.rel (0) target = $region29
    $region28: #{tpu_custom_call.1} parent=1 // pred_region
      %58 = dma.done [#allocation6], 4352
    $region29: #{tpu_custom_call.1} parent=1 // pred_fallthru
      _
    %v59 = vld [vmem:[%s0] sm:$0xff]
    %v60 = vld [vmem:[%s0 + $0x8] sm:$0xff]
    %v61 = vld [vmem:[%s0 + $0x10] sm:$0xff]
    %v62 = vld [vmem:[%s0 + $0x18] sm:$0xff]
    %v63 = vld [vmem:[%s0 + $0x20] sm:$0xff]
    %v64 = vld [vmem:[%s0 + $0x28] sm:$0xff]
    %v65 = vld [vmem:[%s0 + $0x30] sm:$0xff]
    %v66 = vld [vmem:[%s0 + $0x38] sm:$0xff]
    %v67 = vld [vmem:[#allocation2] sm:$0xff]
    %v68 = vld [vmem:[#allocation2 + $0x8] sm:$0xff]
    %v69 = vld [vmem:[#allocation2 + $0x10] sm:$0xff]
    %v70 = vld [vmem:[#allocation2 + $0x18] sm:$0xff]
    %v71 = vld [vmem:[#allocation2 + $0x20] sm:$0xff]
    %v72 = vld [vmem:[#allocation2 + $0x28] sm:$0xff]
    %v73 = vld [vmem:[#allocation2 + $0x30] sm:$0xff]
    %v74 = vld [vmem:[#allocation2 + $0x38] sm:$0xff]
    %v75 = vld [vmem:[#allocation2 + $0x40] sm:$0x1]
    %v76 = vld [vmem:[#allocation2 + $0x48] sm:$0x1]
    %v77 = vld [vmem:[#allocation2 + $0x50] sm:$0x1]
    %v78 = vld [vmem:[#allocation2 + $0x58] sm:$0x1]
    %vm79 = vcmask 138240
    %v81 = vsel %vm79, %v59, 0
    %v84 = vsel %vm79, %v60, 0
    %v87 = vsel %vm79, %v61, 0
    %v90 = vsel %vm79, %v62, 0
    %v93 = vsel %vm79, %v63, 0
    %v96 = vsel %vm79, %v64, 0
    %v99 = vsel %vm79, %v65, 0
    %v102 = vsel %vm79, %v66, 0
    %vm104 = vcmask 1040384
    %v106 = vsel %vm104, %v75, 0
    %v109 = vsel %vm104, %v76, 0
    %v112 = vsel %vm104, %v77, 0
    %v115 = vsel %vm104, %v78, 0
    %117 = vmatprep.subr.mxu0 %v68
    %118 = vmatpush1.msra.mxu0 %v67
    %119 = vmatprep.subr.mxu0 %v72
    %120 = vmatpush1.msra.mxu0 %v71
    %121 = vmatprep.subr.mxu0 %v109
    %122 = vmatpush1.msra.mxu0 %v106
    %123 = vmatprep.subr.mxu0 0.0
    %124 = vmatpush1.msra.mxu0 0.0
    %125 = vmatprep.subr.mxu0 0.0
    %126 = vmatpush1.msra.mxu0 0.0
    %127 = vmatprep.subr.mxu0 0.0
    %128 = vmatpush1.msra.mxu0 0.0
    %129 = vmatprep.subr.mxu0 0.0
    %130 = vmatpush1.msra.mxu0 0.0
    %131 = vmatprep.subr.mxu0 0.0
    %132 = vmatpush1.msra.mxu0 0.0
    %133 = vmatprep.subr.mxu0 0.0
    %134 = vmatpush1.msra.mxu0 0.0
    %135 = vmatprep.subr.mxu0 0.0
    %136 = vmatpush1.msra.mxu0 0.0
    %137 = vmatprep.subr.mxu0 0.0
    %138 = vmatpush1.msra.mxu0 0.0
    %139 = vmatprep.subr.mxu0 0.0
    %140 = vmatpush1.msra.mxu0 0.0
    %141 = vmatprep.subr.mxu0 0.0
    %142 = vmatpush1.msra.mxu0 0.0
    %143 = vmatprep.subr.mxu0 0.0
    %144 = vmatpush1.msra.mxu0 0.0
    %145 = vmatprep.subr.mxu0 0.0
    %146 = vmatpush1.msra.mxu0 0.0
    %147 = vmatprep.subr.mxu0 0.0
    %148 = vmatpush1.msra.mxu0 0.0
    %149 = vmatprep.subr.mxu0 0.0
    %150 = vmatpush1.msra.mxu0 0.0
    %151 = vmatprep.subr.mxu0 0.0
    %152 = vmatpush1.msra.mxu0 0.0
    %153 = vmatprep.subr.mxu0 0.0
    %154 = vmatpush1.msra.mxu0 0.0
    %155 = vmatprep.subr.mxu0 0.0
    %156 = vmatpush1.msra.mxu0 0.0
    %157 = vmatprep.subr.mxu0 0.0
    %158 = vmatpush1.msra.mxu0 0.0
    %159 = vmatprep.subr.mxu0 0.0
    %160 = vmatpush1.msra.mxu0 0.0
    %161 = vmatprep.subr.mxu0 0.0
    %162 = vmatpush1.msra.mxu0 0.0
    %163 = vmatprep.subr.mxu0 0.0
    %164 = vmatpush1.msra.mxu0 0.0
    %165 = vmatprep.subr.mxu0 0.0
    %166 = vmatpush1.msra.mxu0 0.0
    %167 = vmatprep.subr.mxu0 0.0
    %168 = vmatpush1.msra.mxu0 0.0
    %169 = vmatprep.subr.mxu0 0.0
    %170 = vmatpush1.msra.mxu0 0.0
    %171 = vmatprep.subr.mxu0 0.0
    %172 = vmatpush1.msra.mxu0 0.0
    %173 = vmatprep.subr.mxu0 0.0
    %174 = vmatpush1.msra.mxu0 0.0
    %175 = vmatprep.subr.mxu0 0.0
    %176 = vmatpush1.msra.mxu0 0.0
    %177 = vmatprep.subr.mxu0 0.0
    %178 = vmatpush1.msra.mxu0 0.0
    %179 = vmatprep.subr.mxu0 0.0
    %180 = vmatpush1.msra.mxu0 0.0
    %181 = vmatprep.mubr.f32.mxu0 0.0
    %182 = vmatmul.mubr.f32.gmra.mrb[0].mxu0 %v81
    %v183 = vpop.f32.mrb[0].mxu0
    %v184 = vadd.f32 0.0, %v183
    %v185 = vpop.f32.mrb[0].mxu0
    %v186 = vadd.f32 0.0, %v185
    %187 = vmatprep.mubr.f32.mxu0 0.0
    %188 = vmatmul.mubr.f32.gmra.mrb[0].mxu0 %v84
    %v189 = vpop.f32.mrb[0].mxu0
    %v190 = vadd.f32 0.0, %v189
    %v191 = vpop.f32.mrb[0].mxu0
    %v192 = vadd.f32 0.0, %v191
    %193 = vmatprep.mubr.f32.mxu0 0.0
    %194 = vmatmul.mubr.f32.gmra.mrb[0].mxu0 %v87
    %v195 = vpop.f32.mrb[0].mxu0
    %v196 = vadd.f32 0.0, %v195
    %v197 = vpop.f32.mrb[0].mxu0
    %v198 = vadd.f32 0.0, %v197
    %199 = vmatprep.mubr.f32.mxu0 0.0
    %200 = vmatmul.mubr.f32.gmra.mrb[0].mxu0 %v90
    %v201 = vpop.f32.mrb[0].mxu0
    %v202 = vadd.f32 0.0, %v201
    %v203 = vpop.f32.mrb[0].mxu0
    %v204 = vadd.f32 0.0, %v203
    %205 = vmatprep.mubr.f32.mxu0 0.0
    %206 = vmatmul.mubr.f32.gmra.mrb[0].mxu0 %v93
    %v207 = vpop.f32.mrb[0].mxu0
    %v208 = vadd.f32 0.0, %v207
    %v209 = vpop.f32.mrb[0].mxu0
    %v210 = vadd.f32 0.0, %v209
    %211 = vmatprep.mubr.f32.mxu0 0.0
    %212 = vmatmul.mubr.f32.gmra.mrb[0].mxu0 %v96
    %v213 = vpop.f32.mrb[0].mxu0
    %v214 = vadd.f32 0.0, %v213
    %v215 = vpop.f32.mrb[0].mxu0
    %v216 = vadd.f32 0.0, %v215
    %217 = vmatprep.mubr.f32.mxu0 0.0
    %218 = vmatmul.mubr.f32.gmra.mrb[0].mxu0 %v99
    %v219 = vpop.f32.mrb[0].mxu0
    %v220 = vadd.f32 0.0, %v219
    %v221 = vpop.f32.mrb[0].mxu0
    %v222 = vadd.f32 0.0, %v221
    %223 = vmatprep.mubr.f32.mxu0 0.0
    %224 = vmatmul.mubr.f32.gmra.mrb[0].mxu0 %v102
    %v225 = vpop.f32.mrb[0].mxu0
    %v226 = vadd.f32 0.0, %v225
    %v227 = vpop.f32.mrb[0].mxu0
    %v228 = vadd.f32 0.0, %v227
    %229 = vdwg.mxu0
    %230 = vmatprep.subr.mxu0 %v70
    %231 = vmatpush1.msra.mxu0 %v69
    %232 = vmatprep.subr.mxu0 %v74
    %233 = vmatpush1.msra.mxu0 %v73
    %234 = vmatprep.subr.mxu0 %v115
    %235 = vmatpush1.msra.mxu0 %v112
    %236 = vmatprep.subr.mxu0 0.0
    %237 = vmatpush1.msra.mxu0 0.0
    %238 = vmatprep.subr.mxu0 0.0
    %239 = vmatpush1.msra.mxu0 0.0
    %240 = vmatprep.subr.mxu0 0.0
    %241 = vmatpush1.msra.mxu0 0.0
    %242 = vmatprep.subr.mxu0 0.0
    %243 = vmatpush1.msra.mxu0 0.0
    %244 = vmatprep.subr.mxu0 0.0
    %245 = vmatpush1.msra.mxu0 0.0
    %246 = vmatprep.subr.mxu0 0.0
    %247 = vmatpush1.msra.mxu0 0.0
    %248 = vmatprep.subr.mxu0 0.0
    %249 = vmatpush1.msra.mxu0 0.0
    %250 = vmatprep.subr.mxu0 0.0
    %251 = vmatpush1.msra.mxu0 0.0
    %252 = vmatprep.subr.mxu0 0.0
    %253 = vmatpush1.msra.mxu0 0.0
    %254 = vmatprep.subr.mxu0 0.0
    %255 = vmatpush1.msra.mxu0 0.0
    %256 = vmatprep.subr.mxu0 0.0
    %257 = vmatpush1.msra.mxu0 0.0
    %258 = vmatprep.subr.mxu0 0.0
    %259 = vmatpush1.msra.mxu0 0.0
    %260 = vmatprep.subr.mxu0 0.0
    %261 = vmatpush1.msra.mxu0 0.0
    %262 = vmatprep.subr.mxu0 0.0
    %263 = vmatpush1.msra.mxu0 0.0
    %264 = vmatprep.subr.mxu0 0.0
    %265 = vmatpush1.msra.mxu0 0.0
    %266 = vmatprep.subr.mxu0 0.0
    %267 = vmatpush1.msra.mxu0 0.0
    %268 = vmatprep.subr.mxu0 0.0
    %269 = vmatpush1.msra.mxu0 0.0
    %270 = vmatprep.subr.mxu0 0.0
    %271 = vmatpush1.msra.mxu0 0.0
    %272 = vmatprep.subr.mxu0 0.0
    %273 = vmatpush1.msra.mxu0 0.0
    %274 = vmatprep.subr.mxu0 0.0
    %275 = vmatpush1.msra.mxu0 0.0
    %276 = vmatprep.subr.mxu0 0.0
    %277 = vmatpush1.msra.mxu0 0.0
    %278 = vmatprep.subr.mxu0 0.0
    %279 = vmatpush1.msra.mxu0 0.0
    %280 = vmatprep.subr.mxu0 0.0
    %281 = vmatpush1.msra.mxu0 0.0
    %282 = vmatprep.subr.mxu0 0.0
    %283 = vmatpush1.msra.mxu0 0.0
    %284 = vmatprep.subr.mxu0 0.0
    %285 = vmatpush1.msra.mxu0 0.0
    %286 = vmatprep.subr.mxu0 0.0
    %287 = vmatpush1.msra.mxu0 0.0
    %288 = vmatprep.subr.mxu0 0.0
    %289 = vmatpush1.msra.mxu0 0.0
    %290 = vmatprep.subr.mxu0 0.0
    %291 = vmatpush1.msra.mxu0 0.0
    %292 = vmatprep.subr.mxu0 0.0
    %293 = vmatpush1.msra.mxu0 0.0
    %294 = vmatprep.mubr.f32.mxu0 0.0
    %295 = vmatmul.mubr.f32.gmra.mrb[0].mxu0 %v81
    %v296 = vpop.f32.mrb[0].mxu0
    %v297 = vadd.f32 0.0, %v296
    %v298 = vpop.f32.mrb[0].mxu0
    %v299 = vadd.f32 0.0, %v298
    %300 = vmatprep.mubr.f32.mxu0 0.0
    %301 = vmatmul.mubr.f32.gmra.mrb[0].mxu0 %v84
    %v302 = vpop.f32.mrb[0].mxu0
    %v303 = vadd.f32 0.0, %v302
    %v304 = vpop.f32.mrb[0].mxu0
    %v305 = vadd.f32 0.0, %v304
    %306 = vmatprep.mubr.f32.mxu0 0.0
    %307 = vmatmul.mubr.f32.gmra.mrb[0].mxu0 %v87
    %v308 = vpop.f32.mrb[0].mxu0
    %v309 = vadd.f32 0.0, %v308
    %v310 = vpop.f32.mrb[0].mxu0
    %v311 = vadd.f32 0.0, %v310
    %312 = vmatprep.mubr.f32.mxu0 0.0
    %313 = vmatmul.mubr.f32.gmra.mrb[0].mxu0 %v90
    %v314 = vpop.f32.mrb[0].mxu0
    %v315 = vadd.f32 0.0, %v314
    %v316 = vpop.f32.mrb[0].mxu0
    %v317 = vadd.f32 0.0, %v316
    %318 = vmatprep.mubr.f32.mxu0 0.0
    %319 = vmatmul.mubr.f32.gmra.mrb[0].mxu0 %v93
    %v320 = vpop.f32.mrb[0].mxu0
    %v321 = vadd.f32 0.0, %v320
    %v322 = vpop.f32.mrb[0].mxu0
    %v323 = vadd.f32 0.0, %v322
    %324 = vmatprep.mubr.f32.mxu0 0.0
    %325 = vmatmul.mubr.f32.gmra.mrb[0].mxu0 %v96
    %v326 = vpop.f32.mrb[0].mxu0
    %v327 = vadd.f32 0.0, %v326
    %v328 = vpop.f32.mrb[0].mxu0
    %v329 = vadd.f32 0.0, %v328
    %330 = vmatprep.mubr.f32.mxu0 0.0
    %331 = vmatmul.mubr.f32.gmra.mrb[0].mxu0 %v99
    %v332 = vpop.f32.mrb[0].mxu0
    %v333 = vadd.f32 0.0, %v332
    %v334 = vpop.f32.mrb[0].mxu0
    %v335 = vadd.f32 0.0, %v334
    %336 = vmatprep.mubr.f32.mxu0 0.0
    %337 = vmatmul.mubr.f32.gmra.mrb[0].mxu0 %v102
    %v338 = vpop.f32.mrb[0].mxu0
    %v339 = vadd.f32 0.0, %v338
    %v340 = vpop.f32.mrb[0].mxu0
    %v341 = vadd.f32 0.0, %v340
    %342 = vdwg.mxu0
    %v343 = vld [vmem:[#allocation5] sm:$0xff]
    %v344 = vld [vmem:[#allocation5 + $0x8] sm:$0xff]
    %v345 = vld [vmem:[#allocation5 + $0x10] sm:$0xff]
    %v346 = vld [vmem:[#allocation5 + $0x18] sm:$0xff]
    %v347 = vld [vmem:[#allocation5 + $0x20] sm:$0xff]
    %v348 = vld [vmem:[#allocation5 + $0x28] sm:$0xff]
    %v349 = vld [vmem:[#allocation5 + $0x30] sm:$0xff]
    %v350 = vld [vmem:[#allocation5 + $0x38] sm:$0xff]
    %v351 = vld [vmem:[#allocation5 + $0x40] sm:$0xff]
    %v352 = vld [vmem:[#allocation5 + $0x48] sm:$0xff]
    %v353 = vld [vmem:[#allocation5 + $0x50] sm:$0xff]
    %v354 = vld [vmem:[#allocation5 + $0x58] sm:$0xff]
    %v355 = vld [vmem:[#allocation5 + $0x60] sm:$0xff]
    %v356 = vld [vmem:[#allocation5 + $0x68] sm:$0xff]
    %v357 = vld [vmem:[#allocation5 + $0x70] sm:$0xff]
    %v358 = vld [vmem:[#allocation5 + $0x78] sm:$0xff]
    %v359 = vld [vmem:[#allocation5 + $0x80] sm:$0xff]
    %v360 = vld [vmem:[#allocation5 + $0x88] sm:$0xff]
    %v361 = vld [vmem:[#allocation5 + $0x90] sm:$0xff]
    %v362 = vld [vmem:[#allocation5 + $0x98] sm:$0xff]
    %v363 = vld [vmem:[#allocation5 + $0xa0] sm:$0xff]
    %v364 = vld [vmem:[#allocation5 + $0xa8] sm:$0xff]
    %v365 = vld [vmem:[#allocation5 + $0xb0] sm:$0xff]
    %v366 = vld [vmem:[#allocation5 + $0xb8] sm:$0xff]
    %v367 = vld [vmem:[#allocation5 + $0xc0] sm:$0xff]
    %v368 = vld [vmem:[#allocation5 + $0xc8] sm:$0xff]
    %v369 = vld [vmem:[#allocation5 + $0xd0] sm:$0xff]
    %v370 = vld [vmem:[#allocation5 + $0xd8] sm:$0xff]
    %v371 = vld [vmem:[#allocation5 + $0xe0] sm:$0xff]
    %v372 = vld [vmem:[#allocation5 + $0xe8] sm:$0xff]
    %v373 = vld [vmem:[#allocation5 + $0xf0] sm:$0xff]
    %v374 = vld [vmem:[#allocation5 + $0xf8] sm:$0xff]
    %v375 = vld [vmem:[#allocation5 + $0x100] sm:$0xff]
    %v376 = vld [vmem:[#allocation5 + $0x108] sm:$0xff]
    %v377 = vld [vmem:[#allocation5 + $0x110] sm:$0xff]
    %v378 = vld [vmem:[#allocation5 + $0x118] sm:$0xff]
    %v379 = vld [vmem:[#allocation5 + $0x120] sm:$0xff]
    %v380 = vld [vmem:[#allocation5 + $0x128] sm:$0xff]
    %v381 = vld [vmem:[#allocation5 + $0x130] sm:$0xff]
    %v382 = vld [vmem:[#allocation5 + $0x138] sm:$0xff]
    %v383 = vld [vmem:[#allocation5 + $0x140] sm:$0xff]
    %v384 = vld [vmem:[#allocation5 + $0x148] sm:$0xff]
    %v385 = vld [vmem:[#allocation5 + $0x150] sm:$0xff]
    %v386 = vld [vmem:[#allocation5 + $0x158] sm:$0xff]
    %v387 = vld [vmem:[#allocation5 + $0x160] sm:$0xff]
    %v388 = vld [vmem:[#allocation5 + $0x168] sm:$0xff]
    %v389 = vld [vmem:[#allocation5 + $0x170] sm:$0xff]
    %v390 = vld [vmem:[#allocation5 + $0x178] sm:$0xff]
    %v391 = vld [vmem:[#allocation5 + $0x180] sm:$0xff]
    %v392 = vld [vmem:[#allocation5 + $0x188] sm:$0xff]
    %v393 = vld [vmem:[#allocation5 + $0x190] sm:$0xff]
    %v394 = vld [vmem:[#allocation5 + $0x198] sm:$0xff]
    %v395 = vld [vmem:[#allocation5 + $0x1a0] sm:$0xff]
    %v396 = vld [vmem:[#allocation5 + $0x1a8] sm:$0xff]
    %v397 = vld [vmem:[#allocation5 + $0x1b0] sm:$0xff]
    %v398 = vld [vmem:[#allocation5 + $0x1b8] sm:$0xff]
    %v399 = vld [vmem:[#allocation5 + $0x1c0] sm:$0xff]
    %v400 = vld [vmem:[#allocation5 + $0x1c8] sm:$0xff]
    %v401 = vld [vmem:[#allocation5 + $0x1d0] sm:$0xff]
    %v402 = vld [vmem:[#allocation5 + $0x1d8] sm:$0xff]
    %v403 = vld [vmem:[#allocation5 + $0x1e0] sm:$0xff]
    %v404 = vld [vmem:[#allocation5 + $0x1e8] sm:$0xff]
    %v405 = vld [vmem:[#allocation5 + $0x1f0] sm:$0xff]
    %v406 = vld [vmem:[#allocation5 + $0x1f8] sm:$0xff]
    %407 = vmatprep.subr.mxu0 %v344
    %408 = vmatpush1.msra.mxu0 %v343
    %409 = vmatprep.subr.mxu0 %v348
    %410 = vmatpush1.msra.mxu0 %v347
    %411 = vmatprep.subr.mxu0 %v352
    %412 = vmatpush1.msra.mxu0 %v351
    %413 = vmatprep.subr.mxu0 %v356
    %414 = vmatpush1.msra.mxu0 %v355
    %415 = vmatprep.subr.mxu0 %v360
    %416 = vmatpush1.msra.mxu0 %v359
    %417 = vmatprep.subr.mxu0 %v364
    %418 = vmatpush1.msra.mxu0 %v363
    %419 = vmatprep.subr.mxu0 %v368
    %420 = vmatpush1.msra.mxu0 %v367
    %421 = vmatprep.subr.mxu0 %v372
    %422 = vmatpush1.msra.mxu0 %v371
    %423 = vmatprep.subr.mxu0 %v376
    %424 = vmatpush1.msra.mxu0 %v375
    %425 = vmatprep.subr.mxu0 %v380
    %426 = vmatpush1.msra.mxu0 %v379
    %427 = vmatprep.subr.mxu0 %v384
    %428 = vmatpush1.msra.mxu0 %v383
    %429 = vmatprep.subr.mxu0 %v388
    %430 = vmatpush1.msra.mxu0 %v387
    %431 = vmatprep.subr.mxu0 %v392
    %432 = vmatpush1.msra.mxu0 %v391
    %433 = vmatprep.subr.mxu0 %v396
    %434 = vmatpush1.msra.mxu0 %v395
    %435 = vmatprep.subr.mxu0 %v400
    %436 = vmatpush1.msra.mxu0 %v399
    %437 = vmatprep.subr.mxu0 %v404
    %438 = vmatpush1.msra.mxu0 %v403
    %439 = vmatprep.subr.mxu0 0.0
    %440 = vmatpush1.msra.mxu0 0.0
    %441 = vmatprep.subr.mxu0 0.0
    %442 = vmatpush1.msra.mxu0 0.0
    %443 = vmatprep.subr.mxu0 0.0
    %444 = vmatpush1.msra.mxu0 0.0
    %445 = vmatprep.subr.mxu0 0.0
    %446 = vmatpush1.msra.mxu0 0.0
    %447 = vmatprep.subr.mxu0 0.0
    %448 = vmatpush1.msra.mxu0 0.0
    %449 = vmatprep.subr.mxu0 0.0
    %450 = vmatpush1.msra.mxu0 0.0
    %451 = vmatprep.subr.mxu0 0.0
    %452 = vmatpush1.msra.mxu0 0.0
    %453 = vmatprep.subr.mxu0 0.0
    %454 = vmatpush1.msra.mxu0 0.0
    %455 = vmatprep.subr.mxu0 0.0
    %456 = vmatpush1.msra.mxu0 0.0
    %457 = vmatprep.subr.mxu0 0.0
    %458 = vmatpush1.msra.mxu0 0.0
    %459 = vmatprep.subr.mxu0 0.0
    %460 = vmatpush1.msra.mxu0 0.0
    %461 = vmatprep.subr.mxu0 0.0
    %462 = vmatpush1.msra.mxu0 0.0
    %463 = vmatprep.subr.mxu0 0.0
    %464 = vmatpush1.msra.mxu0 0.0
    %465 = vmatprep.subr.mxu0 0.0
    %466 = vmatpush1.msra.mxu0 0.0
    %467 = vmatprep.subr.mxu0 0.0
    %468 = vmatpush1.msra.mxu0 0.0
    %469 = vmatprep.subr.mxu0 0.0
    %470 = vmatpush1.msra.mxu0 0.0
    %471 = vmatprep.mubr.f32.mxu0 0.0
    %472 = vmatmul.mubr.f32.gmra.mrb[0].mxu0 0.0
    %v473 = vpop.f32.mrb[0].mxu0
    %v474 = vadd.f32 0.0, %v473
    %v475 = vpop.f32.mrb[0].mxu0
    %v476 = vadd.f32 0.0, %v475
    %477 = vdwg.mxu0
    %478 = vmatprep.subr.mxu0 %v346
    %479 = vmatpush1.msra.mxu0 %v345
    %480 = vmatprep.subr.mxu0 %v350
    %481 = vmatpush1.msra.mxu0 %v349
    %482 = vmatprep.subr.mxu0 %v354
    %483 = vmatpush1.msra.mxu0 %v353
    %484 = vmatprep.subr.mxu0 %v358
    %485 = vmatpush1.msra.mxu0 %v357
    %486 = vmatprep.subr.mxu0 %v362
    %487 = vmatpush1.msra.mxu0 %v361
    %488 = vmatprep.subr.mxu0 %v366
    %489 = vmatpush1.msra.mxu0 %v365
    %490 = vmatprep.subr.mxu0 %v370
    %491 = vmatpush1.msra.mxu0 %v369
    %492 = vmatprep.subr.mxu0 %v374
    %493 = vmatpush1.msra.mxu0 %v373
    %494 = vmatprep.subr.mxu0 %v378
    %495 = vmatpush1.msra.mxu0 %v377
    %496 = vmatprep.subr.mxu0 %v382
    %497 = vmatpush1.msra.mxu0 %v381
    %498 = vmatprep.subr.mxu0 %v386
    %499 = vmatpush1.msra.mxu0 %v385
    %500 = vmatprep.subr.mxu0 %v390
    %501 = vmatpush1.msra.mxu0 %v389
    %502 = vmatprep.subr.mxu0 %v394
    %503 = vmatpush1.msra.mxu0 %v393
    %504 = vmatprep.subr.mxu0 %v398
    %505 = vmatpush1.msra.mxu0 %v397
    %506 = vmatprep.subr.mxu0 %v402
    %507 = vmatpush1.msra.mxu0 %v401
    %508 = vmatprep.subr.mxu0 %v406
    %509 = vmatpush1.msra.mxu0 %v405
    %510 = vmatprep.subr.mxu0 0.0
    %511 = vmatpush1.msra.mxu0 0.0
    %512 = vmatprep.subr.mxu0 0.0
    %513 = vmatpush1.msra.mxu0 0.0
    %514 = vmatprep.subr.mxu0 0.0
    %515 = vmatpush1.msra.mxu0 0.0
    %516 = vmatprep.subr.mxu0 0.0
    %517 = vmatpush1.msra.mxu0 0.0
    %518 = vmatprep.subr.mxu0 0.0
    %519 = vmatpush1.msra.mxu0 0.0
    %520 = vmatprep.subr.mxu0 0.0
    %521 = vmatpush1.msra.mxu0 0.0
    %522 = vmatprep.subr.mxu0 0.0
    %523 = vmatpush1.msra.mxu0 0.0
    %524 = vmatprep.subr.mxu0 0.0
    %525 = vmatpush1.msra.mxu0 0.0
    %526 = vmatprep.subr.mxu0 0.0
    %527 = vmatpush1.msra.mxu0 0.0
    %528 = vmatprep.subr.mxu0 0.0
    %529 = vmatpush1.msra.mxu0 0.0
    %530 = vmatprep.subr.mxu0 0.0
    %531 = vmatpush1.msra.mxu0 0.0
    %532 = vmatprep.subr.mxu0 0.0
    %533 = vmatpush1.msra.mxu0 0.0
    %534 = vmatprep.subr.mxu0 0.0
    %535 = vmatpush1.msra.mxu0 0.0
    %536 = vmatprep.subr.mxu0 0.0
    %537 = vmatpush1.msra.mxu0 0.0
    %538 = vmatprep.subr.mxu0 0.0
    %539 = vmatpush1.msra.mxu0 0.0
    %540 = vmatprep.subr.mxu0 0.0
    %541 = vmatpush1.msra.mxu0 0.0
    %542 = vmatprep.mubr.f32.mxu0 0.0
    %543 = vmatmul.mubr.f32.gmra.mrb[0].mxu0 0.0
    %v544 = vpop.f32.mrb[0].mxu0
    %v545 = vadd.f32 0.0, %v544
    %v546 = vpop.f32.mrb[0].mxu0
    %v547 = vadd.f32 0.0, %v546
    %548 = vdwg.mxu0
    %v549 = vadd.f32 %v184, %v474
    %v550 = vadd.f32 %v186, %v476
    %v551 = vadd.f32 %v297, %v545
    %v552 = vadd.f32 %v299, %v547
    %v553 = vxor.u32 %v549, 2147483648
    %v554 = vxor.u32 %v550, 2147483648
    %v555 = vxor.u32 %v551, 2147483648
    %v556 = vmul.f32 %v553, 1.442695
    %v557 = vpow.pop %v556
    %v558 = vmul.f32 %v554, 1.442695
    %v559 = vpow.pop %v558
    %v560 = vmul.f32 %v555, 1.442695
    %v561 = vpow.pop %v560
    %v562 = vadd.f32 %v557, 1.0
    %v563 = vadd.f32 %v559, 1.0
    %v564 = vadd.f32 %v561, 1.0
    %v565 = vrcp.pop %v562
    %v566 = vmul.f32 1.0, %v565
    %v567 = vrcp.pop %v563
    %v568 = vmul.f32 1.0, %v567
    %v569 = vrcp.pop %v564
    %v570 = vmul.f32 1.0, %v569
    %v571 = vtanh.pop %v552
    %v572 = vmul.f32 %v568, 0.0
    %v573 = vmul.f32 %v566, %v571
    %v574 = vadd.f32 %v572, %v573
    %v575 = vtanh.pop %v574
    %v576 = vmul.f32 %v570, %v575
    %577 = vmatprep.subr.mxu0 %v344
    %578 = vmatpush1.msra.mxu0 %v343
    %579 = vmatprep.subr.mxu0 %v348
    %580 = vmatpush1.msra.mxu0 %v347
    %581 = vmatprep.subr.mxu0 %v352
    %582 = vmatpush1.msra.mxu0 %v351
    %583 = vmatprep.subr.mxu0 %v356
    %584 = vmatpush1.msra.mxu0 %v355
    %585 = vmatprep.subr.mxu0 %v360
    %586 = vmatpush1.msra.mxu0 %v359
    %587 = vmatprep.subr.mxu0 %v364
    %588 = vmatpush1.msra.mxu0 %v363
    %589 = vmatprep.subr.mxu0 %v368
    %590 = vmatpush1.msra.mxu0 %v367
    %591 = vmatprep.subr.mxu0 %v372
    %592 = vmatpush1.msra.mxu0 %v371
    %593 = vmatprep.subr.mxu0 %v376
    %594 = vmatpush1.msra.mxu0 %v375
    %595 = vmatprep.subr.mxu0 %v380
    %596 = vmatpush1.msra.mxu0 %v379
    %597 = vmatprep.subr.mxu0 %v384
    %598 = vmatpush1.msra.mxu0 %v383
    %599 = vmatprep.subr.mxu0 %v388
    %600 = vmatpush1.msra.mxu0 %v387
    %601 = vmatprep.subr.mxu0 %v392
    %602 = vmatpush1.msra.mxu0 %v391
    %603 = vmatprep.subr.mxu0 %v396
    %604 = vmatpush1.msra.mxu0 %v395
    %605 = vmatprep.subr.mxu0 %v400
    %606 = vmatpush1.msra.mxu0 %v399
    %607 = vmatprep.subr.mxu0 %v404
    %608 = vmatpush1.msra.mxu0 %v403
    %609 = vmatprep.subr.mxu0 0.0
    %610 = vmatpush1.msra.mxu0 0.0
    %611 = vmatprep.subr.mxu0 0.0
    %612 = vmatpush1.msra.mxu0 0.0
    %613 = vmatprep.subr.mxu0 0.0
    %614 = vmatpush1.msra.mxu0 0.0
    %615 = vmatprep.subr.mxu0 0.0
    %616 = vmatpush1.msra.mxu0 0.0
    %617 = vmatprep.subr.mxu0 0.0
    %618 = vmatpush1.msra.mxu0 0.0
    %619 = vmatprep.subr.mxu0 0.0
    %620 = vmatpush1.msra.mxu0 0.0
    %621 = vmatprep.subr.mxu0 0.0
    %622 = vmatpush1.msra.mxu0 0.0
    %623 = vmatprep.subr.mxu0 0.0
    %624 = vmatpush1.msra.mxu0 0.0
    %625 = vmatprep.subr.mxu0 0.0
    %626 = vmatpush1.msra.mxu0 0.0
    %627 = vmatprep.subr.mxu0 0.0
    %628 = vmatpush1.msra.mxu0 0.0
    %629 = vmatprep.subr.mxu0 0.0
    %630 = vmatpush1.msra.mxu0 0.0
    %631 = vmatprep.subr.mxu0 0.0
    %632 = vmatpush1.msra.mxu0 0.0
    %633 = vmatprep.subr.mxu0 0.0
    %634 = vmatpush1.msra.mxu0 0.0
    %635 = vmatprep.subr.mxu0 0.0
    %636 = vmatpush1.msra.mxu0 0.0
    %637 = vmatprep.subr.mxu0 0.0
    %638 = vmatpush1.msra.mxu0 0.0
    %639 = vmatprep.subr.mxu0 0.0
    %640 = vmatpush1.msra.mxu0 0.0
    %641 = vmatprep.mubr.f32.mxu0 0.0
    %642 = vmatmul.mubr.f32.gmra.mrb[0].mxu0 %v576
    %v643 = vpop.f32.mrb[0].mxu0
    %v644 = vadd.f32 0.0, %v643
    %v645 = vpop.f32.mrb[0].mxu0
    %v646 = vadd.f32 0.0, %v645
    %647 = vdwg.mxu0
    %648 = vmatprep.subr.mxu0 %v346
    %649 = vmatpush1.msra.mxu0 %v345
    %650 = vmatprep.subr.mxu0 %v350
    %651 = vmatpush1.msra.mxu0 %v349
    %652 = vmatprep.subr.mxu0 %v354
    %653 = vmatpush1.msra.mxu0 %v353
    %654 = vmatprep.subr.mxu0 %v358
    %655 = vmatpush1.msra.mxu0 %v357
    %656 = vmatprep.subr.mxu0 %v362
    %657 = vmatpush1.msra.mxu0 %v361
    %658 = vmatprep.subr.mxu0 %v366
    %659 = vmatpush1.msra.mxu0 %v365
    %660 = vmatprep.subr.mxu0 %v370
    %661 = vmatpush1.msra.mxu0 %v369
    %662 = vmatprep.subr.mxu0 %v374
    %663 = vmatpush1.msra.mxu0 %v373
    %664 = vmatprep.subr.mxu0 %v378
    %665 = vmatpush1.msra.mxu0 %v377
    %666 = vmatprep.subr.mxu0 %v382
    %667 = vmatpush1.msra.mxu0 %v381
    %668 = vmatprep.subr.mxu0 %v386
    %669 = vmatpush1.msra.mxu0 %v385
    %670 = vmatprep.subr.mxu0 %v390
    %671 = vmatpush1.msra.mxu0 %v389
    %672 = vmatprep.subr.mxu0 %v394
    %673 = vmatpush1.msra.mxu0 %v393
    %674 = vmatprep.subr.mxu0 %v398
    %675 = vmatpush1.msra.mxu0 %v397
    %676 = vmatprep.subr.mxu0 %v402
    %677 = vmatpush1.msra.mxu0 %v401
    %678 = vmatprep.subr.mxu0 %v406
    %679 = vmatpush1.msra.mxu0 %v405
    %680 = vmatprep.subr.mxu0 0.0
    %681 = vmatpush1.msra.mxu0 0.0
    %682 = vmatprep.subr.mxu0 0.0
    %683 = vmatpush1.msra.mxu0 0.0
    %684 = vmatprep.subr.mxu0 0.0
    %685 = vmatpush1.msra.mxu0 0.0
    %686 = vmatprep.subr.mxu0 0.0
    %687 = vmatpush1.msra.mxu0 0.0
    %688 = vmatprep.subr.mxu0 0.0
    %689 = vmatpush1.msra.mxu0 0.0
    %690 = vmatprep.subr.mxu0 0.0
    %691 = vmatpush1.msra.mxu0 0.0
    %692 = vmatprep.subr.mxu0 0.0
    %693 = vmatpush1.msra.mxu0 0.0
    %694 = vmatprep.subr.mxu0 0.0
    %695 = vmatpush1.msra.mxu0 0.0
    %696 = vmatprep.subr.mxu0 0.0
    %697 = vmatpush1.msra.mxu0 0.0
    %698 = vmatprep.subr.mxu0 0.0
    %699 = vmatpush1.msra.mxu0 0.0
    %700 = vmatprep.subr.mxu0 0.0
    %701 = vmatpush1.msra.mxu0 0.0
    %702 = vmatprep.subr.mxu0 0.0
    %703 = vmatpush1.msra.mxu0 0.0
    %704 = vmatprep.subr.mxu0 0.0
    %705 = vmatpush1.msra.mxu0 0.0
    %706 = vmatprep.subr.mxu0 0.0
    %707 = vmatpush1.msra.mxu0 0.0
    %708 = vmatprep.subr.mxu0 0.0
    %709 = vmatpush1.msra.mxu0 0.0
    %710 = vmatprep.subr.mxu0 0.0
    %711 = vmatpush1.msra.mxu0 0.0
    %712 = vmatprep.mubr.f32.mxu0 0.0
    %713 = vmatmul.mubr.f32.gmra.mrb[0].mxu0 %v576
    %v714 = vpop.f32.mrb[0].mxu0
    %v715 = vadd.f32 0.0, %v714
    %v716 = vpop.f32.mrb[0].mxu0
    %v717 = vadd.f32 0.0, %v716
    %718 = vdwg.mxu0
    %v719 = vadd.f32 %v190, %v644
    %v720 = vadd.f32 %v192, %v646
    %v721 = vadd.f32 %v303, %v715
    %v722 = vadd.f32 %v305, %v717
    %v723 = vxor.u32 %v719, 2147483648
    %v724 = vxor.u32 %v720, 2147483648
    %v725 = vxor.u32 %v721, 2147483648
    %v726 = vmul.f32 %v723, 1.442695
    %v727 = vpow.pop %v726
    %v728 = vmul.f32 %v724, 1.442695
    %v729 = vpow.pop %v728
    %v730 = vmul.f32 %v725, 1.442695
    %v731 = vpow.pop %v730
    %v732 = vadd.f32 %v727, 1.0
    %v733 = vadd.f32 %v729, 1.0
    %v734 = vadd.f32 %v731, 1.0
    %v735 = vrcp.pop %v732
    %v736 = vmul.f32 1.0, %v735
    %v737 = vrcp.pop %v733
    %v738 = vmul.f32 1.0, %v737
    %v739 = vrcp.pop %v734
    %v740 = vmul.f32 1.0, %v739
    %v741 = vtanh.pop %v722
    %v742 = vmul.f32 %v738, %v574
    %v743 = vmul.f32 %v736, %v741
    %v744 = vadd.f32 %v742, %v743
    %v745 = vtanh.pop %v744
    %v746 = vmul.f32 %v740, %v745
    %747 = vmatprep.subr.mxu0 %v344
    %748 = vmatpush1.msra.mxu0 %v343
    %749 = vmatprep.subr.mxu0 %v348
    %750 = vmatpush1.msra.mxu0 %v347
    %751 = vmatprep.subr.mxu0 %v352
    %752 = vmatpush1.msra.mxu0 %v351
    %753 = vmatprep.subr.mxu0 %v356
    %754 = vmatpush1.msra.mxu0 %v355
    %755 = vmatprep.subr.mxu0 %v360
    %756 = vmatpush1.msra.mxu0 %v359
    %757 = vmatprep.subr.mxu0 %v364
    %758 = vmatpush1.msra.mxu0 %v363
    %759 = vmatprep.subr.mxu0 %v368
    %760 = vmatpush1.msra.mxu0 %v367
    %761 = vmatprep.subr.mxu0 %v372
    %762 = vmatpush1.msra.mxu0 %v371
    %763 = vmatprep.subr.mxu0 %v376
    %764 = vmatpush1.msra.mxu0 %v375
    %765 = vmatprep.subr.mxu0 %v380
    %766 = vmatpush1.msra.mxu0 %v379
    %767 = vmatprep.subr.mxu0 %v384
    %768 = vmatpush1.msra.mxu0 %v383
    %769 = vmatprep.subr.mxu0 %v388
    %770 = vmatpush1.msra.mxu0 %v387
    %771 = vmatprep.subr.mxu0 %v392
    %772 = vmatpush1.msra.mxu0 %v391
    %773 = vmatprep.subr.mxu0 %v396
    %774 = vmatpush1.msra.mxu0 %v395
    %775 = vmatprep.subr.mxu0 %v400
    %776 = vmatpush1.msra.mxu0 %v399
    %777 = vmatprep.subr.mxu0 %v404
    %778 = vmatpush1.msra.mxu0 %v403
    %779 = vmatprep.subr.mxu0 0.0
    %780 = vmatpush1.msra.mxu0 0.0
    %781 = vmatprep.subr.mxu0 0.0
    %782 = vmatpush1.msra.mxu0 0.0
    %783 = vmatprep.subr.mxu0 0.0
    %784 = vmatpush1.msra.mxu0 0.0
    %785 = vmatprep.subr.mxu0 0.0
    %786 = vmatpush1.msra.mxu0 0.0
    %787 = vmatprep.subr.mxu0 0.0
    %788 = vmatpush1.msra.mxu0 0.0
    %789 = vmatprep.subr.mxu0 0.0
    %790 = vmatpush1.msra.mxu0 0.0
    %791 = vmatprep.subr.mxu0 0.0
    %792 = vmatpush1.msra.mxu0 0.0
    %793 = vmatprep.subr.mxu0 0.0
    %794 = vmatpush1.msra.mxu0 0.0
    %795 = vmatprep.subr.mxu0 0.0
    %796 = vmatpush1.msra.mxu0 0.0
    %797 = vmatprep.subr.mxu0 0.0
    %798 = vmatpush1.msra.mxu0 0.0
    %799 = vmatprep.subr.mxu0 0.0
    %800 = vmatpush1.msra.mxu0 0.0
    %801 = vmatprep.subr.mxu0 0.0
    %802 = vmatpush1.msra.mxu0 0.0
    %803 = vmatprep.subr.mxu0 0.0
    %804 = vmatpush1.msra.mxu0 0.0
    %805 = vmatprep.subr.mxu0 0.0
    %806 = vmatpush1.msra.mxu0 0.0
    %807 = vmatprep.subr.mxu0 0.0
    %808 = vmatpush1.msra.mxu0 0.0
    %809 = vmatprep.subr.mxu0 0.0
    %810 = vmatpush1.msra.mxu0 0.0
    %811 = vmatprep.mubr.f32.mxu0 0.0
    %812 = vmatmul.mubr.f32.gmra.mrb[0].mxu0 %v746
    %v813 = vpop.f32.mrb[0].mxu0
    %v814 = vadd.f32 0.0, %v813
    %v815 = vpop.f32.mrb[0].mxu0
    %v816 = vadd.f32 0.0, %v815
    %817 = vdwg.mxu0
    %818 = vmatprep.subr.mxu0 %v346
    %819 = vmatpush1.msra.mxu0 %v345
    %820 = vmatprep.subr.mxu0 %v350
    %821 = vmatpush1.msra.mxu0 %v349
    %822 = vmatprep.subr.mxu0 %v354
    %823 = vmatpush1.msra.mxu0 %v353
    %824 = vmatprep.subr.mxu0 %v358
    %825 = vmatpush1.msra.mxu0 %v357
    %826 = vmatprep.subr.mxu0 %v362
    %827 = vmatpush1.msra.mxu0 %v361
    %828 = vmatprep.subr.mxu0 %v366
    %829 = vmatpush1.msra.mxu0 %v365
    %830 = vmatprep.subr.mxu0 %v370
    %831 = vmatpush1.msra.mxu0 %v369
    %832 = vmatprep.subr.mxu0 %v374
    %833 = vmatpush1.msra.mxu0 %v373
    %834 = vmatprep.subr.mxu0 %v378
    %835 = vmatpush1.msra.mxu0 %v377
    %836 = vmatprep.subr.mxu0 %v382
    %837 = vmatpush1.msra.mxu0 %v381
    %838 = vmatprep.subr.mxu0 %v386
    %839 = vmatpush1.msra.mxu0 %v385
    %840 = vmatprep.subr.mxu0 %v390
    %841 = vmatpush1.msra.mxu0 %v389
    %842 = vmatprep.subr.mxu0 %v394
    %843 = vmatpush1.msra.mxu0 %v393
    %844 = vmatprep.subr.mxu0 %v398
    %845 = vmatpush1.msra.mxu0 %v397
    %846 = vmatprep.subr.mxu0 %v402
    %847 = vmatpush1.msra.mxu0 %v401
    %848 = vmatprep.subr.mxu0 %v406
    %849 = vmatpush1.msra.mxu0 %v405
    %850 = vmatprep.subr.mxu0 0.0
    %851 = vmatpush1.msra.mxu0 0.0
    %852 = vmatprep.subr.mxu0 0.0
    %853 = vmatpush1.msra.mxu0 0.0
    %854 = vmatprep.subr.mxu0 0.0
    %855 = vmatpush1.msra.mxu0 0.0
    %856 = vmatprep.subr.mxu0 0.0
    %857 = vmatpush1.msra.mxu0 0.0
    %858 = vmatprep.subr.mxu0 0.0
    %859 = vmatpush1.msra.mxu0 0.0
    %860 = vmatprep.subr.mxu0 0.0
    %861 = vmatpush1.msra.mxu0 0.0
    %862 = vmatprep.subr.mxu0 0.0
    %863 = vmatpush1.msra.mxu0 0.0
    %864 = vmatprep.subr.mxu0 0.0
    %865 = vmatpush1.msra.mxu0 0.0
    %866 = vmatprep.subr.mxu0 0.0
    %867 = vmatpush1.msra.mxu0 0.0
    %868 = vmatprep.subr.mxu0 0.0
    %869 = vmatpush1.msra.mxu0 0.0
    %870 = vmatprep.subr.mxu0 0.0
    %871 = vmatpush1.msra.mxu0 0.0
    %872 = vmatprep.subr.mxu0 0.0
    %873 = vmatpush1.msra.mxu0 0.0
    %874 = vmatprep.subr.mxu0 0.0
    %875 = vmatpush1.msra.mxu0 0.0
    %876 = vmatprep.subr.mxu0 0.0
    %877 = vmatpush1.msra.mxu0 0.0
    %878 = vmatprep.subr.mxu0 0.0
    %879 = vmatpush1.msra.mxu0 0.0
    %880 = vmatprep.subr.mxu0 0.0
    %881 = vmatpush1.msra.mxu0 0.0
    %882 = vmatprep.mubr.f32.mxu0 0.0
    %883 = vmatmul.mubr.f32.gmra.mrb[0].mxu0 %v746
    %v884 = vpop.f32.mrb[0].mxu0
    %v885 = vadd.f32 0.0, %v884
    %v886 = vpop.f32.mrb[0].mxu0
    %v887 = vadd.f32 0.0, %v886
    %888 = vdwg.mxu0
    %v889 = vadd.f32 %v196, %v814
    %v890 = vadd.f32 %v198, %v816
    %v891 = vadd.f32 %v309, %v885
    %v892 = vadd.f32 %v311, %v887
    %v893 = vxor.u32 %v889, 2147483648
    %v894 = vxor.u32 %v890, 2147483648
    %v895 = vxor.u32 %v891, 2147483648
    %v896 = vmul.f32 %v893, 1.442695
    %v897 = vpow.pop %v896
    %v898 = vmul.f32 %v894, 1.442695
    %v899 = vpow.pop %v898
    %v900 = vmul.f32 %v895, 1.442695
    %v901 = vpow.pop %v900
    %v902 = vadd.f32 %v897, 1.0
    %v903 = vadd.f32 %v899, 1.0
    %v904 = vadd.f32 %v901, 1.0
    %v905 = vrcp.pop %v902
    %v906 = vmul.f32 1.0, %v905
    %v907 = vrcp.pop %v903
    %v908 = vmul.f32 1.0, %v907
    %v909 = vrcp.pop %v904
    %v910 = vmul.f32 1.0, %v909
    %v911 = vtanh.pop %v892
    %v912 = vmul.f32 %v908, %v744
    %v913 = vmul.f32 %v906, %v911
    %v914 = vadd.f32 %v912, %v913
    %v915 = vtanh.pop %v914
    %v916 = vmul.f32 %v910, %v915
    %917 = vmatprep.subr.mxu0 %v344
    %918 = vmatpush1.msra.mxu0 %v343
    %919 = vmatprep.subr.mxu0 %v348
    %920 = vmatpush1.msra.mxu0 %v347
    %921 = vmatprep.subr.mxu0 %v352
    %922 = vmatpush1.msra.mxu0 %v351
    %923 = vmatprep.subr.mxu0 %v356
    %924 = vmatpush1.msra.mxu0 %v355
    %925 = vmatprep.subr.mxu0 %v360
    %926 = vmatpush1.msra.mxu0 %v359
    %927 = vmatprep.subr.mxu0 %v364
    %928 = vmatpush1.msra.mxu0 %v363
    %929 = vmatprep.subr.mxu0 %v368
    %930 = vmatpush1.msra.mxu0 %v367
    %931 = vmatprep.subr.mxu0 %v372
    %932 = vmatpush1.msra.mxu0 %v371
    %933 = vmatprep.subr.mxu0 %v376
    %934 = vmatpush1.msra.mxu0 %v375
    %935 = vmatprep.subr.mxu0 %v380
    %936 = vmatpush1.msra.mxu0 %v379
    %937 = vmatprep.subr.mxu0 %v384
    %938 = vmatpush1.msra.mxu0 %v383
    %939 = vmatprep.subr.mxu0 %v388
    %940 = vmatpush1.msra.mxu0 %v387
    %941 = vmatprep.subr.mxu0 %v392
    %942 = vmatpush1.msra.mxu0 %v391
    %943 = vmatprep.subr.mxu0 %v396
    %944 = vmatpush1.msra.mxu0 %v395
    %945 = vmatprep.subr.mxu0 %v400
    %946 = vmatpush1.msra.mxu0 %v399
    %947 = vmatprep.subr.mxu0 %v404
    %948 = vmatpush1.msra.mxu0 %v403
    %949 = vmatprep.subr.mxu0 0.0
    %950 = vmatpush1.msra.mxu0 0.0
    %951 = vmatprep.subr.mxu0 0.0
    %952 = vmatpush1.msra.mxu0 0.0
    %953 = vmatprep.subr.mxu0 0.0
    %954 = vmatpush1.msra.mxu0 0.0
    %955 = vmatprep.subr.mxu0 0.0
    %956 = vmatpush1.msra.mxu0 0.0
    %957 = vmatprep.subr.mxu0 0.0
    %958 = vmatpush1.msra.mxu0 0.0
    %959 = vmatprep.subr.mxu0 0.0
    %960 = vmatpush1.msra.mxu0 0.0
    %961 = vmatprep.subr.mxu0 0.0
    %962 = vmatpush1.msra.mxu0 0.0
    %963 = vmatprep.subr.mxu0 0.0
    %964 = vmatpush1.msra.mxu0 0.0
    %965 = vmatprep.subr.mxu0 0.0
    %966 = vmatpush1.msra.mxu0 0.0
    %967 = vmatprep.subr.mxu0 0.0
    %968 = vmatpush1.msra.mxu0 0.0
    %969 = vmatprep.subr.mxu0 0.0
    %970 = vmatpush1.msra.mxu0 0.0
    %971 = vmatprep.subr.mxu0 0.0
    %972 = vmatpush1.msra.mxu0 0.0
    %973 = vmatprep.subr.mxu0 0.0
    %974 = vmatpush1.msra.mxu0 0.0
    %975 = vmatprep.subr.mxu0 0.0
    %976 = vmatpush1.msra.mxu0 0.0
    %977 = vmatprep.subr.mxu0 0.0
    %978 = vmatpush1.msra.mxu0 0.0
    %979 = vmatprep.subr.mxu0 0.0
    %980 = vmatpush1.msra.mxu0 0.0
    %981 = vmatprep.mubr.f32.mxu0 0.0
    %982 = vmatmul.mubr.f32.gmra.mrb[0].mxu0 %v916
    %v983 = vpop.f32.mrb[0].mxu0
    %v984 = vadd.f32 0.0, %v983
    %v985 = vpop.f32.mrb[0].mxu0
    %v986 = vadd.f32 0.0, %v985
    %987 = vdwg.mxu0
    %988 = vmatprep.subr.mxu0 %v346
    %989 = vmatpush1.msra.mxu0 %v345
    %990 = vmatprep.subr.mxu0 %v350
    %991 = vmatpush1.msra.mxu0 %v349
    %992 = vmatprep.subr.mxu0 %v354
    %993 = vmatpush1.msra.mxu0 %v353
    %994 = vmatprep.subr.mxu0 %v358
    %995 = vmatpush1.msra.mxu0 %v357
    %996 = vmatprep.subr.mxu0 %v362
    %997 = vmatpush1.msra.mxu0 %v361
    %998 = vmatprep.subr.mxu0 %v366
    %999 = vmatpush1.msra.mxu0 %v365
    %1000 = vmatprep.subr.mxu0 %v370
    %1001 = vmatpush1.msra.mxu0 %v369
    %1002 = vmatprep.subr.mxu0 %v374
    %1003 = vmatpush1.msra.mxu0 %v373
    %1004 = vmatprep.subr.mxu0 %v378
    %1005 = vmatpush1.msra.mxu0 %v377
    %1006 = vmatprep.subr.mxu0 %v382
    %1007 = vmatpush1.msra.mxu0 %v381
    %1008 = vmatprep.subr.mxu0 %v386
    %1009 = vmatpush1.msra.mxu0 %v385
    %1010 = vmatprep.subr.mxu0 %v390
    %1011 = vmatpush1.msra.mxu0 %v389
    %1012 = vmatprep.subr.mxu0 %v394
    %1013 = vmatpush1.msra.mxu0 %v393
    %1014 = vmatprep.subr.mxu0 %v398
    %1015 = vmatpush1.msra.mxu0 %v397
    %1016 = vmatprep.subr.mxu0 %v402
    %1017 = vmatpush1.msra.mxu0 %v401
    %1018 = vmatprep.subr.mxu0 %v406
    %1019 = vmatpush1.msra.mxu0 %v405
    %1020 = vmatprep.subr.mxu0 0.0
    %1021 = vmatpush1.msra.mxu0 0.0
    %1022 = vmatprep.subr.mxu0 0.0
    %1023 = vmatpush1.msra.mxu0 0.0
    %1024 = vmatprep.subr.mxu0 0.0
    %1025 = vmatpush1.msra.mxu0 0.0
    %1026 = vmatprep.subr.mxu0 0.0
    %1027 = vmatpush1.msra.mxu0 0.0
    %1028 = vmatprep.subr.mxu0 0.0
    %1029 = vmatpush1.msra.mxu0 0.0
    %1030 = vmatprep.subr.mxu0 0.0
    %1031 = vmatpush1.msra.mxu0 0.0
    %1032 = vmatprep.subr.mxu0 0.0
    %1033 = vmatpush1.msra.mxu0 0.0
    %1034 = vmatprep.subr.mxu0 0.0
    %1035 = vmatpush1.msra.mxu0 0.0
    %1036 = vmatprep.subr.mxu0 0.0
    %1037 = vmatpush1.msra.mxu0 0.0
    %1038 = vmatprep.subr.mxu0 0.0
    %1039 = vmatpush1.msra.mxu0 0.0
    %1040 = vmatprep.subr.mxu0 0.0
    %1041 = vmatpush1.msra.mxu0 0.0
    %1042 = vmatprep.subr.mxu0 0.0
    %1043 = vmatpush1.msra.mxu0 0.0
    %1044 = vmatprep.subr.mxu0 0.0
    %1045 = vmatpush1.msra.mxu0 0.0
    %1046 = vmatprep.subr.mxu0 0.0
    %1047 = vmatpush1.msra.mxu0 0.0
    %1048 = vmatprep.subr.mxu0 0.0
    %1049 = vmatpush1.msra.mxu0 0.0
    %1050 = vmatprep.subr.mxu0 0.0
    %1051 = vmatpush1.msra.mxu0 0.0
    %1052 = vmatprep.mubr.f32.mxu0 0.0
    %1053 = vmatmul.mubr.f32.gmra.mrb[0].mxu0 %v916
    %v1054 = vpop.f32.mrb[0].mxu0
    %v1055 = vadd.f32 0.0, %v1054
    %v1056 = vpop.f32.mrb[0].mxu0
    %v1057 = vadd.f32 0.0, %v1056
    %1058 = vdwg.mxu0
    %v1059 = vadd.f32 %v202, %v984
    %v1060 = vadd.f32 %v204, %v986
    %v1061 = vadd.f32 %v315, %v1055
    %v1062 = vadd.f32 %v317, %v1057
    %v1063 = vxor.u32 %v1059, 2147483648
    %v1064 = vxor.u32 %v1060, 2147483648
    %v1065 = vxor.u32 %v1061, 2147483648
    %v1066 = vmul.f32 %v1063, 1.442695
    %v1067 = vpow.pop %v1066
    %v1068 = vmul.f32 %v1064, 1.442695
    %v1069 = vpow.pop %v1068
    %v1070 = vmul.f32 %v1065, 1.442695
    %v1071 = vpow.pop %v1070
    %v1072 = vadd.f32 %v1067, 1.0
    %v1073 = vadd.f32 %v1069, 1.0
    %v1074 = vadd.f32 %v1071, 1.0
    %v1075 = vrcp.pop %v1072
    %v1076 = vmul.f32 1.0, %v1075
    %v1077 = vrcp.pop %v1073
    %v1078 = vmul.f32 1.0, %v1077
    %v1079 = vrcp.pop %v1074
    %v1080 = vmul.f32 1.0, %v1079
    %v1081 = vtanh.pop %v1062
    %v1082 = vmul.f32 %v1078, %v914
    %v1083 = vmul.f32 %v1076, %v1081
    %v1084 = vadd.f32 %v1082, %v1083
    %v1085 = vtanh.pop %v1084
    %v1086 = vmul.f32 %v1080, %v1085
    %1087 = vmatprep.subr.mxu0 %v344
    %1088 = vmatpush1.msra.mxu0 %v343
    %1089 = vmatprep.subr.mxu0 %v348
    %1090 = vmatpush1.msra.mxu0 %v347
    %1091 = vmatprep.subr.mxu0 %v352
    %1092 = vmatpush1.msra.mxu0 %v351
    %1093 = vmatprep.subr.mxu0 %v356
    %1094 = vmatpush1.msra.mxu0 %v355
    %1095 = vmatprep.subr.mxu0 %v360
    %1096 = vmatpush1.msra.mxu0 %v359
    %1097 = vmatprep.subr.mxu0 %v364
    %1098 = vmatpush1.msra.mxu0 %v363
    %1099 = vmatprep.subr.mxu0 %v368
    %1100 = vmatpush1.msra.mxu0 %v367
    %1101 = vmatprep.subr.mxu0 %v372
    %1102 = vmatpush1.msra.mxu0 %v371
    %1103 = vmatprep.subr.mxu0 %v376
    %1104 = vmatpush1.msra.mxu0 %v375
    %1105 = vmatprep.subr.mxu0 %v380
    %1106 = vmatpush1.msra.mxu0 %v379
    %1107 = vmatprep.subr.mxu0 %v384
    %1108 = vmatpush1.msra.mxu0 %v383
    %1109 = vmatprep.subr.mxu0 %v388
    %1110 = vmatpush1.msra.mxu0 %v387
    %1111 = vmatprep.subr.mxu0 %v392
    %1112 = vmatpush1.msra.mxu0 %v391
    %1113 = vmatprep.subr.mxu0 %v396
    %1114 = vmatpush1.msra.mxu0 %v395
    %1115 = vmatprep.subr.mxu0 %v400
    %1116 = vmatpush1.msra.mxu0 %v399
    %1117 = vmatprep.subr.mxu0 %v404
    %1118 = vmatpush1.msra.mxu0 %v403
    %1119 = vmatprep.subr.mxu0 0.0
    %1120 = vmatpush1.msra.mxu0 0.0
    %1121 = vmatprep.subr.mxu0 0.0
    %1122 = vmatpush1.msra.mxu0 0.0
    %1123 = vmatprep.subr.mxu0 0.0
    %1124 = vmatpush1.msra.mxu0 0.0
    %1125 = vmatprep.subr.mxu0 0.0
    %1126 = vmatpush1.msra.mxu0 0.0
    %1127 = vmatprep.subr.mxu0 0.0
    %1128 = vmatpush1.msra.mxu0 0.0
    %1129 = vmatprep.subr.mxu0 0.0
    %1130 = vmatpush1.msra.mxu0 0.0
    %1131 = vmatprep.subr.mxu0 0.0
    %1132 = vmatpush1.msra.mxu0 0.0
    %1133 = vmatprep.subr.mxu0 0.0
    %1134 = vmatpush1.msra.mxu0 0.0
    %1135 = vmatprep.subr.mxu0 0.0
    %1136 = vmatpush1.msra.mxu0 0.0
    %1137 = vmatprep.subr.mxu0 0.0
    %1138 = vmatpush1.msra.mxu0 0.0
    %1139 = vmatprep.subr.mxu0 0.0
    %1140 = vmatpush1.msra.mxu0 0.0
    %1141 = vmatprep.subr.mxu0 0.0
    %1142 = vmatpush1.msra.mxu0 0.0
    %1143 = vmatprep.subr.mxu0 0.0
    %1144 = vmatpush1.msra.mxu0 0.0
    %1145 = vmatprep.subr.mxu0 0.0
    %1146 = vmatpush1.msra.mxu0 0.0
    %1147 = vmatprep.subr.mxu0 0.0
    %1148 = vmatpush1.msra.mxu0 0.0
    %1149 = vmatprep.subr.mxu0 0.0
    %1150 = vmatpush1.msra.mxu0 0.0
    %1151 = vmatprep.mubr.f32.mxu0 0.0
    %1152 = vmatmul.mubr.f32.gmra.mrb[0].mxu0 %v1086
    %v1153 = vpop.f32.mrb[0].mxu0
    %v1154 = vadd.f32 0.0, %v1153
    %v1155 = vpop.f32.mrb[0].mxu0
    %v1156 = vadd.f32 0.0, %v1155
    %1157 = vdwg.mxu0
    %1158 = vmatprep.subr.mxu0 %v346
    %1159 = vmatpush1.msra.mxu0 %v345
    %1160 = vmatprep.subr.mxu0 %v350
    %1161 = vmatpush1.msra.mxu0 %v349
    %1162 = vmatprep.subr.mxu0 %v354
    %1163 = vmatpush1.msra.mxu0 %v353
    %1164 = vmatprep.subr.mxu0 %v358
    %1165 = vmatpush1.msra.mxu0 %v357
    %1166 = vmatprep.subr.mxu0 %v362
    %1167 = vmatpush1.msra.mxu0 %v361
    %1168 = vmatprep.subr.mxu0 %v366
    %1169 = vmatpush1.msra.mxu0 %v365
    %1170 = vmatprep.subr.mxu0 %v370
    %1171 = vmatpush1.msra.mxu0 %v369
    %1172 = vmatprep.subr.mxu0 %v374
    %1173 = vmatpush1.msra.mxu0 %v373
    %1174 = vmatprep.subr.mxu0 %v378
    %1175 = vmatpush1.msra.mxu0 %v377
    %1176 = vmatprep.subr.mxu0 %v382
    %1177 = vmatpush1.msra.mxu0 %v381
    %1178 = vmatprep.subr.mxu0 %v386
    %1179 = vmatpush1.msra.mxu0 %v385
    %1180 = vmatprep.subr.mxu0 %v390
    %1181 = vmatpush1.msra.mxu0 %v389
    %1182 = vmatprep.subr.mxu0 %v394
    %1183 = vmatpush1.msra.mxu0 %v393
    %1184 = vmatprep.subr.mxu0 %v398
    %1185 = vmatpush1.msra.mxu0 %v397
    %1186 = vmatprep.subr.mxu0 %v402
    %1187 = vmatpush1.msra.mxu0 %v401
    %1188 = vmatprep.subr.mxu0 %v406
    %1189 = vmatpush1.msra.mxu0 %v405
    %1190 = vmatprep.subr.mxu0 0.0
    %1191 = vmatpush1.msra.mxu0 0.0
    %1192 = vmatprep.subr.mxu0 0.0
    %1193 = vmatpush1.msra.mxu0 0.0
    %1194 = vmatprep.subr.mxu0 0.0
    %1195 = vmatpush1.msra.mxu0 0.0
    %1196 = vmatprep.subr.mxu0 0.0
    %1197 = vmatpush1.msra.mxu0 0.0
    %1198 = vmatprep.subr.mxu0 0.0
    %1199 = vmatpush1.msra.mxu0 0.0
    %1200 = vmatprep.subr.mxu0 0.0
    %1201 = vmatpush1.msra.mxu0 0.0
    %1202 = vmatprep.subr.mxu0 0.0
    %1203 = vmatpush1.msra.mxu0 0.0
    %1204 = vmatprep.subr.mxu0 0.0
    %1205 = vmatpush1.msra.mxu0 0.0
    %1206 = vmatprep.subr.mxu0 0.0
    %1207 = vmatpush1.msra.mxu0 0.0
    %1208 = vmatprep.subr.mxu0 0.0
    %1209 = vmatpush1.msra.mxu0 0.0
    %1210 = vmatprep.subr.mxu0 0.0
    %1211 = vmatpush1.msra.mxu0 0.0
    %1212 = vmatprep.subr.mxu0 0.0
    %1213 = vmatpush1.msra.mxu0 0.0
    %1214 = vmatprep.subr.mxu0 0.0
    %1215 = vmatpush1.msra.mxu0 0.0
    %1216 = vmatprep.subr.mxu0 0.0
    %1217 = vmatpush1.msra.mxu0 0.0
    %1218 = vmatprep.subr.mxu0 0.0
    %1219 = vmatpush1.msra.mxu0 0.0
    %1220 = vmatprep.subr.mxu0 0.0
    %1221 = vmatpush1.msra.mxu0 0.0
    %1222 = vmatprep.mubr.f32.mxu0 0.0
    %1223 = vmatmul.mubr.f32.gmra.mrb[0].mxu0 %v1086
    %v1224 = vpop.f32.mrb[0].mxu0
    %v1225 = vadd.f32 0.0, %v1224
    %v1226 = vpop.f32.mrb[0].mxu0
    %v1227 = vadd.f32 0.0, %v1226
    %1228 = vdwg.mxu0
    %v1229 = vadd.f32 %v208, %v1154
    %v1230 = vadd.f32 %v210, %v1156
    %v1231 = vadd.f32 %v321, %v1225
    %v1232 = vadd.f32 %v323, %v1227
    %v1233 = vxor.u32 %v1229, 2147483648
    %v1234 = vxor.u32 %v1230, 2147483648
    %v1235 = vxor.u32 %v1231, 2147483648
    %v1236 = vmul.f32 %v1233, 1.442695
    %v1237 = vpow.pop %v1236
    %v1238 = vmul.f32 %v1234, 1.442695
    %v1239 = vpow.pop %v1238
    %v1240 = vmul.f32 %v1235, 1.442695
    %v1241 = vpow.pop %v1240
    %v1242 = vadd.f32 %v1237, 1.0
    %v1243 = vadd.f32 %v1239, 1.0
    %v1244 = vadd.f32 %v1241, 1.0
    %v1245 = vrcp.pop %v1242
    %v1246 = vmul.f32 1.0, %v1245
    %v1247 = vrcp.pop %v1243
    %v1248 = vmul.f32 1.0, %v1247
    %v1249 = vrcp.pop %v1244
    %v1250 = vmul.f32 1.0, %v1249
    %v1251 = vtanh.pop %v1232
    %v1252 = vmul.f32 %v1248, %v1084
    %v1253 = vmul.f32 %v1246, %v1251
    %v1254 = vadd.f32 %v1252, %v1253
    %v1255 = vtanh.pop %v1254
    %v1256 = vmul.f32 %v1250, %v1255
    %1257 = vmatprep.subr.mxu0 %v344
    %1258 = vmatpush1.msra.mxu0 %v343
    %1259 = vmatprep.subr.mxu0 %v348
    %1260 = vmatpush1.msra.mxu0 %v347
    %1261 = vmatprep.subr.mxu0 %v352
    %1262 = vmatpush1.msra.mxu0 %v351
    %1263 = vmatprep.subr.mxu0 %v356
    %1264 = vmatpush1.msra.mxu0 %v355
    %1265 = vmatprep.subr.mxu0 %v360
    %1266 = vmatpush1.msra.mxu0 %v359
    %1267 = vmatprep.subr.mxu0 %v364
    %1268 = vmatpush1.msra.mxu0 %v363
    %1269 = vmatprep.subr.mxu0 %v368
    %1270 = vmatpush1.msra.mxu0 %v367
    %1271 = vmatprep.subr.mxu0 %v372
    %1272 = vmatpush1.msra.mxu0 %v371
    %1273 = vmatprep.subr.mxu0 %v376
    %1274 = vmatpush1.msra.mxu0 %v375
    %1275 = vmatprep.subr.mxu0 %v380
    %1276 = vmatpush1.msra.mxu0 %v379
    %1277 = vmatprep.subr.mxu0 %v384
    %1278 = vmatpush1.msra.mxu0 %v383
    %1279 = vmatprep.subr.mxu0 %v388
    %1280 = vmatpush1.msra.mxu0 %v387
    %1281 = vmatprep.subr.mxu0 %v392
    %1282 = vmatpush1.msra.mxu0 %v391
    %1283 = vmatprep.subr.mxu0 %v396
    %1284 = vmatpush1.msra.mxu0 %v395
    %1285 = vmatprep.subr.mxu0 %v400
    %1286 = vmatpush1.msra.mxu0 %v399
    %1287 = vmatprep.subr.mxu0 %v404
    %1288 = vmatpush1.msra.mxu0 %v403
    %1289 = vmatprep.subr.mxu0 0.0
    %1290 = vmatpush1.msra.mxu0 0.0
    %1291 = vmatprep.subr.mxu0 0.0
    %1292 = vmatpush1.msra.mxu0 0.0
    %1293 = vmatprep.subr.mxu0 0.0
    %1294 = vmatpush1.msra.mxu0 0.0
    %1295 = vmatprep.subr.mxu0 0.0
    %1296 = vmatpush1.msra.mxu0 0.0
    %1297 = vmatprep.subr.mxu0 0.0
    %1298 = vmatpush1.msra.mxu0 0.0
    %1299 = vmatprep.subr.mxu0 0.0
    %1300 = vmatpush1.msra.mxu0 0.0
    %1301 = vmatprep.subr.mxu0 0.0
    %1302 = vmatpush1.msra.mxu0 0.0
    %1303 = vmatprep.subr.mxu0 0.0
    %1304 = vmatpush1.msra.mxu0 0.0
    %1305 = vmatprep.subr.mxu0 0.0
    %1306 = vmatpush1.msra.mxu0 0.0
    %1307 = vmatprep.subr.mxu0 0.0
    %1308 = vmatpush1.msra.mxu0 0.0
    %1309 = vmatprep.subr.mxu0 0.0
    %1310 = vmatpush1.msra.mxu0 0.0
    %1311 = vmatprep.subr.mxu0 0.0
    %1312 = vmatpush1.msra.mxu0 0.0
    %1313 = vmatprep.subr.mxu0 0.0
    %1314 = vmatpush1.msra.mxu0 0.0
    %1315 = vmatprep.subr.mxu0 0.0
    %1316 = vmatpush1.msra.mxu0 0.0
    %1317 = vmatprep.subr.mxu0 0.0
    %1318 = vmatpush1.msra.mxu0 0.0
    %1319 = vmatprep.subr.mxu0 0.0
    %1320 = vmatpush1.msra.mxu0 0.0
    %1321 = vmatprep.mubr.f32.mxu0 0.0
    %1322 = vmatmul.mubr.f32.gmra.mrb[0].mxu0 %v1256
    %v1323 = vpop.f32.mrb[0].mxu0
    %v1324 = vadd.f32 0.0, %v1323
    %v1325 = vpop.f32.mrb[0].mxu0
    %v1326 = vadd.f32 0.0, %v1325
    %1327 = vdwg.mxu0
    %1328 = vmatprep.subr.mxu0 %v346
    %1329 = vmatpush1.msra.mxu0 %v345
    %1330 = vmatprep.subr.mxu0 %v350
    %1331 = vmatpush1.msra.mxu0 %v349
    %1332 = vmatprep.subr.mxu0 %v354
    %1333 = vmatpush1.msra.mxu0 %v353
    %1334 = vmatprep.subr.mxu0 %v358
    %1335 = vmatpush1.msra.mxu0 %v357
    %1336 = vmatprep.subr.mxu0 %v362
    %1337 = vmatpush1.msra.mxu0 %v361
    %1338 = vmatprep.subr.mxu0 %v366
    %1339 = vmatpush1.msra.mxu0 %v365
    %1340 = vmatprep.subr.mxu0 %v370
    %1341 = vmatpush1.msra.mxu0 %v369
    %1342 = vmatprep.subr.mxu0 %v374
    %1343 = vmatpush1.msra.mxu0 %v373
    %1344 = vmatprep.subr.mxu0 %v378
    %1345 = vmatpush1.msra.mxu0 %v377
    %1346 = vmatprep.subr.mxu0 %v382
    %1347 = vmatpush1.msra.mxu0 %v381
    %1348 = vmatprep.subr.mxu0 %v386
    %1349 = vmatpush1.msra.mxu0 %v385
    %1350 = vmatprep.subr.mxu0 %v390
    %1351 = vmatpush1.msra.mxu0 %v389
    %1352 = vmatprep.subr.mxu0 %v394
    %1353 = vmatpush1.msra.mxu0 %v393
    %1354 = vmatprep.subr.mxu0 %v398
    %1355 = vmatpush1.msra.mxu0 %v397
    %1356 = vmatprep.subr.mxu0 %v402
    %1357 = vmatpush1.msra.mxu0 %v401
    %1358 = vmatprep.subr.mxu0 %v406
    %1359 = vmatpush1.msra.mxu0 %v405
    %1360 = vmatprep.subr.mxu0 0.0
    %1361 = vmatpush1.msra.mxu0 0.0
    %1362 = vmatprep.subr.mxu0 0.0
    %1363 = vmatpush1.msra.mxu0 0.0
    %1364 = vmatprep.subr.mxu0 0.0
    %1365 = vmatpush1.msra.mxu0 0.0
    %1366 = vmatprep.subr.mxu0 0.0
    %1367 = vmatpush1.msra.mxu0 0.0
    %1368 = vmatprep.subr.mxu0 0.0
    %1369 = vmatpush1.msra.mxu0 0.0
    %1370 = vmatprep.subr.mxu0 0.0
    %1371 = vmatpush1.msra.mxu0 0.0
    %1372 = vmatprep.subr.mxu0 0.0
    %1373 = vmatpush1.msra.mxu0 0.0
    %1374 = vmatprep.subr.mxu0 0.0
    %1375 = vmatpush1.msra.mxu0 0.0
    %1376 = vmatprep.subr.mxu0 0.0
    %1377 = vmatpush1.msra.mxu0 0.0
    %1378 = vmatprep.subr.mxu0 0.0
    %1379 = vmatpush1.msra.mxu0 0.0
    %1380 = vmatprep.subr.mxu0 0.0
    %1381 = vmatpush1.msra.mxu0 0.0
    %1382 = vmatprep.subr.mxu0 0.0
    %1383 = vmatpush1.msra.mxu0 0.0
    %1384 = vmatprep.subr.mxu0 0.0
    %1385 = vmatpush1.msra.mxu0 0.0
    %1386 = vmatprep.subr.mxu0 0.0
    %1387 = vmatpush1.msra.mxu0 0.0
    %1388 = vmatprep.subr.mxu0 0.0
    %1389 = vmatpush1.msra.mxu0 0.0
    %1390 = vmatprep.subr.mxu0 0.0
    %1391 = vmatpush1.msra.mxu0 0.0
    %1392 = vmatprep.mubr.f32.mxu0 0.0
    %1393 = vmatmul.mubr.f32.gmra.mrb[0].mxu0 %v1256
    %v1394 = vpop.f32.mrb[0].mxu0
    %v1395 = vadd.f32 0.0, %v1394
    %v1396 = vpop.f32.mrb[0].mxu0
    %v1397 = vadd.f32 0.0, %v1396
    %1398 = vdwg.mxu0
    %v1399 = vadd.f32 %v214, %v1324
    %v1400 = vadd.f32 %v216, %v1326
    %v1401 = vadd.f32 %v327, %v1395
    %v1402 = vadd.f32 %v329, %v1397
    %v1403 = vxor.u32 %v1399, 2147483648
    %v1404 = vxor.u32 %v1400, 2147483648
    %v1405 = vxor.u32 %v1401, 2147483648
    %v1406 = vmul.f32 %v1403, 1.442695
    %v1407 = vpow.pop %v1406
    %v1408 = vmul.f32 %v1404, 1.442695
    %v1409 = vpow.pop %v1408
    %v1410 = vmul.f32 %v1405, 1.442695
    %v1411 = vpow.pop %v1410
    %v1412 = vadd.f32 %v1407, 1.0
    %v1413 = vadd.f32 %v1409, 1.0
    %v1414 = vadd.f32 %v1411, 1.0
    %v1415 = vrcp.pop %v1412
    %v1416 = vmul.f32 1.0, %v1415
    %v1417 = vrcp.pop %v1413
    %v1418 = vmul.f32 1.0, %v1417
    %v1419 = vrcp.pop %v1414
    %v1420 = vmul.f32 1.0, %v1419
    %v1421 = vtanh.pop %v1402
    %v1422 = vmul.f32 %v1418, %v1254
    %v1423 = vmul.f32 %v1416, %v1421
    %v1424 = vadd.f32 %v1422, %v1423
    %v1425 = vtanh.pop %v1424
    %v1426 = vmul.f32 %v1420, %v1425
    %1427 = vmatprep.subr.mxu0 %v344
    %1428 = vmatpush1.msra.mxu0 %v343
    %1429 = vmatprep.subr.mxu0 %v348
    %1430 = vmatpush1.msra.mxu0 %v347
    %1431 = vmatprep.subr.mxu0 %v352
    %1432 = vmatpush1.msra.mxu0 %v351
    %1433 = vmatprep.subr.mxu0 %v356
    %1434 = vmatpush1.msra.mxu0 %v355
    %1435 = vmatprep.subr.mxu0 %v360
    %1436 = vmatpush1.msra.mxu0 %v359
    %1437 = vmatprep.subr.mxu0 %v364
    %1438 = vmatpush1.msra.mxu0 %v363
    %1439 = vmatprep.subr.mxu0 %v368
    %1440 = vmatpush1.msra.mxu0 %v367
    %1441 = vmatprep.subr.mxu0 %v372
    %1442 = vmatpush1.msra.mxu0 %v371
    %1443 = vmatprep.subr.mxu0 %v376
    %1444 = vmatpush1.msra.mxu0 %v375
    %1445 = vmatprep.subr.mxu0 %v380
    %1446 = vmatpush1.msra.mxu0 %v379
    %1447 = vmatprep.subr.mxu0 %v384
    %1448 = vmatpush1.msra.mxu0 %v383
    %1449 = vmatprep.subr.mxu0 %v388
    %1450 = vmatpush1.msra.mxu0 %v387
    %1451 = vmatprep.subr.mxu0 %v392
    %1452 = vmatpush1.msra.mxu0 %v391
    %1453 = vmatprep.subr.mxu0 %v396
    %1454 = vmatpush1.msra.mxu0 %v395
    %1455 = vmatprep.subr.mxu0 %v400
    %1456 = vmatpush1.msra.mxu0 %v399
    %1457 = vmatprep.subr.mxu0 %v404
    %1458 = vmatpush1.msra.mxu0 %v403
    %1459 = vmatprep.subr.mxu0 0.0
    %1460 = vmatpush1.msra.mxu0 0.0
    %1461 = vmatprep.subr.mxu0 0.0
    %1462 = vmatpush1.msra.mxu0 0.0
    %1463 = vmatprep.subr.mxu0 0.0
    %1464 = vmatpush1.msra.mxu0 0.0
    %1465 = vmatprep.subr.mxu0 0.0
    %1466 = vmatpush1.msra.mxu0 0.0
    %1467 = vmatprep.subr.mxu0 0.0
    %1468 = vmatpush1.msra.mxu0 0.0
    %1469 = vmatprep.subr.mxu0 0.0
    %1470 = vmatpush1.msra.mxu0 0.0
    %1471 = vmatprep.subr.mxu0 0.0
    %1472 = vmatpush1.msra.mxu0 0.0
    %1473 = vmatprep.subr.mxu0 0.0
    %1474 = vmatpush1.msra.mxu0 0.0
    %1475 = vmatprep.subr.mxu0 0.0
    %1476 = vmatpush1.msra.mxu0 0.0
    %1477 = vmatprep.subr.mxu0 0.0
    %1478 = vmatpush1.msra.mxu0 0.0
    %1479 = vmatprep.subr.mxu0 0.0
    %1480 = vmatpush1.msra.mxu0 0.0
    %1481 = vmatprep.subr.mxu0 0.0
    %1482 = vmatpush1.msra.mxu0 0.0
    %1483 = vmatprep.subr.mxu0 0.0
    %1484 = vmatpush1.msra.mxu0 0.0
    %1485 = vmatprep.subr.mxu0 0.0
    %1486 = vmatpush1.msra.mxu0 0.0
    %1487 = vmatprep.subr.mxu0 0.0
    %1488 = vmatpush1.msra.mxu0 0.0
    %1489 = vmatprep.subr.mxu0 0.0
    %1490 = vmatpush1.msra.mxu0 0.0
    %1491 = vmatprep.mubr.f32.mxu0 0.0
    %1492 = vmatmul.mubr.f32.gmra.mrb[0].mxu0 %v1426
    %v1493 = vpop.f32.mrb[0].mxu0
    %v1494 = vadd.f32 0.0, %v1493
    %v1495 = vpop.f32.mrb[0].mxu0
    %v1496 = vadd.f32 0.0, %v1495
    %1497 = vdwg.mxu0
    %1498 = vmatprep.subr.mxu0 %v346
    %1499 = vmatpush1.msra.mxu0 %v345
    %1500 = vmatprep.subr.mxu0 %v350
    %1501 = vmatpush1.msra.mxu0 %v349
    %1502 = vmatprep.subr.mxu0 %v354
    %1503 = vmatpush1.msra.mxu0 %v353
    %1504 = vmatprep.subr.mxu0 %v358
    %1505 = vmatpush1.msra.mxu0 %v357
    %1506 = vmatprep.subr.mxu0 %v362
    %1507 = vmatpush1.msra.mxu0 %v361
    %1508 = vmatprep.subr.mxu0 %v366
    %1509 = vmatpush1.msra.mxu0 %v365
    %1510 = vmatprep.subr.mxu0 %v370
    %1511 = vmatpush1.msra.mxu0 %v369
    %1512 = vmatprep.subr.mxu0 %v374
    %1513 = vmatpush1.msra.mxu0 %v373
    %1514 = vmatprep.subr.mxu0 %v378
    %1515 = vmatpush1.msra.mxu0 %v377
    %1516 = vmatprep.subr.mxu0 %v382
    %1517 = vmatpush1.msra.mxu0 %v381
    %1518 = vmatprep.subr.mxu0 %v386
    %1519 = vmatpush1.msra.mxu0 %v385
    %1520 = vmatprep.subr.mxu0 %v390
    %1521 = vmatpush1.msra.mxu0 %v389
    %1522 = vmatprep.subr.mxu0 %v394
    %1523 = vmatpush1.msra.mxu0 %v393
    %1524 = vmatprep.subr.mxu0 %v398
    %1525 = vmatpush1.msra.mxu0 %v397
    %1526 = vmatprep.subr.mxu0 %v402
    %1527 = vmatpush1.msra.mxu0 %v401
    %1528 = vmatprep.subr.mxu0 %v406
    %1529 = vmatpush1.msra.mxu0 %v405
    %1530 = vmatprep.subr.mxu0 0.0
    %1531 = vmatpush1.msra.mxu0 0.0
    %1532 = vmatprep.subr.mxu0 0.0
    %1533 = vmatpush1.msra.mxu0 0.0
    %1534 = vmatprep.subr.mxu0 0.0
    %1535 = vmatpush1.msra.mxu0 0.0
    %1536 = vmatprep.subr.mxu0 0.0
    %1537 = vmatpush1.msra.mxu0 0.0
    %1538 = vmatprep.subr.mxu0 0.0
    %1539 = vmatpush1.msra.mxu0 0.0
    %1540 = vmatprep.subr.mxu0 0.0
    %1541 = vmatpush1.msra.mxu0 0.0
    %1542 = vmatprep.subr.mxu0 0.0
    %1543 = vmatpush1.msra.mxu0 0.0
    %1544 = vmatprep.subr.mxu0 0.0
    %1545 = vmatpush1.msra.mxu0 0.0
    %1546 = vmatprep.subr.mxu0 0.0
    %1547 = vmatpush1.msra.mxu0 0.0
    %1548 = vmatprep.subr.mxu0 0.0
    %1549 = vmatpush1.msra.mxu0 0.0
    %1550 = vmatprep.subr.mxu0 0.0
    %1551 = vmatpush1.msra.mxu0 0.0
    %1552 = vmatprep.subr.mxu0 0.0
    %1553 = vmatpush1.msra.mxu0 0.0
    %1554 = vmatprep.subr.mxu0 0.0
    %1555 = vmatpush1.msra.mxu0 0.0
    %1556 = vmatprep.subr.mxu0 0.0
    %1557 = vmatpush1.msra.mxu0 0.0
    %1558 = vmatprep.subr.mxu0 0.0
    %1559 = vmatpush1.msra.mxu0 0.0
    %1560 = vmatprep.subr.mxu0 0.0
    %1561 = vmatpush1.msra.mxu0 0.0
    %1562 = vmatprep.mubr.f32.mxu0 0.0
    %1563 = vmatmul.mubr.f32.gmra.mrb[0].mxu0 %v1426
    %v1564 = vpop.f32.mrb[0].mxu0
    %v1565 = vadd.f32 0.0, %v1564
    %v1566 = vpop.f32.mrb[0].mxu0
    %v1567 = vadd.f32 0.0, %v1566
    %1568 = vdwg.mxu0
    %v1569 = vadd.f32 %v220, %v1494
    %v1570 = vadd.f32 %v222, %v1496
    %v1571 = vadd.f32 %v333, %v1565
    %v1572 = vadd.f32 %v335, %v1567
    %v1573 = vxor.u32 %v1569, 2147483648
    %v1574 = vxor.u32 %v1570, 2147483648
    %v1575 = vxor.u32 %v1571, 2147483648
    %v1576 = vmul.f32 %v1573, 1.442695
    %v1577 = vpow.pop %v1576
    %v1578 = vmul.f32 %v1574, 1.442695
    %v1579 = vpow.pop %v1578
    %v1580 = vmul.f32 %v1575, 1.442695
    %v1581 = vpow.pop %v1580
    %v1582 = vadd.f32 %v1577, 1.0
    %v1583 = vadd.f32 %v1579, 1.0
    %v1584 = vadd.f32 %v1581, 1.0
    %v1585 = vrcp.pop %v1582
    %v1586 = vmul.f32 1.0, %v1585
    %v1587 = vrcp.pop %v1583
    %v1588 = vmul.f32 1.0, %v1587
    %v1589 = vrcp.pop %v1584
    %v1590 = vmul.f32 1.0, %v1589
    %v1591 = vtanh.pop %v1572
    %v1592 = vmul.f32 %v1588, %v1424
    %v1593 = vmul.f32 %v1586, %v1591
    %v1594 = vadd.f32 %v1592, %v1593
    %v1595 = vtanh.pop %v1594
    %v1596 = vmul.f32 %v1590, %v1595
    %1597 = vmatprep.subr.mxu0 %v344
    %1598 = vmatpush1.msra.mxu0 %v343
    %1599 = vmatprep.subr.mxu0 %v348
    %1600 = vmatpush1.msra.mxu0 %v347
    %1601 = vmatprep.subr.mxu0 %v352
    %1602 = vmatpush1.msra.mxu0 %v351
    %1603 = vmatprep.subr.mxu0 %v356
    %1604 = vmatpush1.msra.mxu0 %v355
    %1605 = vmatprep.subr.mxu0 %v360
    %1606 = vmatpush1.msra.mxu0 %v359
    %1607 = vmatprep.subr.mxu0 %v364
    %1608 = vmatpush1.msra.mxu0 %v363
    %1609 = vmatprep.subr.mxu0 %v368
    %1610 = vmatpush1.msra.mxu0 %v367
    %1611 = vmatprep.subr.mxu0 %v372
    %1612 = vmatpush1.msra.mxu0 %v371
    %1613 = vmatprep.subr.mxu0 %v376
    %1614 = vmatpush1.msra.mxu0 %v375
    %1615 = vmatprep.subr.mxu0 %v380
    %1616 = vmatpush1.msra.mxu0 %v379
    %1617 = vmatprep.subr.mxu0 %v384
    %1618 = vmatpush1.msra.mxu0 %v383
    %1619 = vmatprep.subr.mxu0 %v388
    %1620 = vmatpush1.msra.mxu0 %v387
    %1621 = vmatprep.subr.mxu0 %v392
    %1622 = vmatpush1.msra.mxu0 %v391
    %1623 = vmatprep.subr.mxu0 %v396
    %1624 = vmatpush1.msra.mxu0 %v395
    %1625 = vmatprep.subr.mxu0 %v400
    %1626 = vmatpush1.msra.mxu0 %v399
    %1627 = vmatprep.subr.mxu0 %v404
    %1628 = vmatpush1.msra.mxu0 %v403
    %1629 = vmatprep.subr.mxu0 0.0
    %1630 = vmatpush1.msra.mxu0 0.0
    %1631 = vmatprep.subr.mxu0 0.0
    %1632 = vmatpush1.msra.mxu0 0.0
    %1633 = vmatprep.subr.mxu0 0.0
    %1634 = vmatpush1.msra.mxu0 0.0
    %1635 = vmatprep.subr.mxu0 0.0
    %1636 = vmatpush1.msra.mxu0 0.0
    %1637 = vmatprep.subr.mxu0 0.0
    %1638 = vmatpush1.msra.mxu0 0.0
    %1639 = vmatprep.subr.mxu0 0.0
    %1640 = vmatpush1.msra.mxu0 0.0
    %1641 = vmatprep.subr.mxu0 0.0
    %1642 = vmatpush1.msra.mxu0 0.0
    %1643 = vmatprep.subr.mxu0 0.0
    %1644 = vmatpush1.msra.mxu0 0.0
    %1645 = vmatprep.subr.mxu0 0.0
    %1646 = vmatpush1.msra.mxu0 0.0
    %1647 = vmatprep.subr.mxu0 0.0
    %1648 = vmatpush1.msra.mxu0 0.0
    %1649 = vmatprep.subr.mxu0 0.0
    %1650 = vmatpush1.msra.mxu0 0.0
    %1651 = vmatprep.subr.mxu0 0.0
    %1652 = vmatpush1.msra.mxu0 0.0
    %1653 = vmatprep.subr.mxu0 0.0
    %1654 = vmatpush1.msra.mxu0 0.0
    %1655 = vmatprep.subr.mxu0 0.0
    %1656 = vmatpush1.msra.mxu0 0.0
    %1657 = vmatprep.subr.mxu0 0.0
    %1658 = vmatpush1.msra.mxu0 0.0
    %1659 = vmatprep.subr.mxu0 0.0
    %1660 = vmatpush1.msra.mxu0 0.0
    %1661 = vmatprep.mubr.f32.mxu0 0.0
    %1662 = vmatmul.mubr.f32.gmra.mrb[0].mxu0 %v1596
    %v1663 = vpop.f32.mrb[0].mxu0
    %v1664 = vadd.f32 0.0, %v1663
    %v1665 = vpop.f32.mrb[0].mxu0
    %v1666 = vadd.f32 0.0, %v1665
    %1667 = vdwg.mxu0
    %1668 = vmatprep.subr.mxu0 %v346
    %1669 = vmatpush1.msra.mxu0 %v345
    %1670 = vmatprep.subr.mxu0 %v350
    %1671 = vmatpush1.msra.mxu0 %v349
    %1672 = vmatprep.subr.mxu0 %v354
    %1673 = vmatpush1.msra.mxu0 %v353
    %1674 = vmatprep.subr.mxu0 %v358
    %1675 = vmatpush1.msra.mxu0 %v357
    %1676 = vmatprep.subr.mxu0 %v362
    %1677 = vmatpush1.msra.mxu0 %v361
    %1678 = vmatprep.subr.mxu0 %v366
    %1679 = vmatpush1.msra.mxu0 %v365
    %1680 = vmatprep.subr.mxu0 %v370
    %1681 = vmatpush1.msra.mxu0 %v369
    %1682 = vmatprep.subr.mxu0 %v374
    %1683 = vmatpush1.msra.mxu0 %v373
    %1684 = vmatprep.subr.mxu0 %v378
    %1685 = vmatpush1.msra.mxu0 %v377
    %1686 = vmatprep.subr.mxu0 %v382
    %1687 = vmatpush1.msra.mxu0 %v381
    %1688 = vmatprep.subr.mxu0 %v386
    %1689 = vmatpush1.msra.mxu0 %v385
    %1690 = vmatprep.subr.mxu0 %v390
    %1691 = vmatpush1.msra.mxu0 %v389
    %1692 = vmatprep.subr.mxu0 %v394
    %1693 = vmatpush1.msra.mxu0 %v393
    %1694 = vmatprep.subr.mxu0 %v398
    %1695 = vmatpush1.msra.mxu0 %v397
    %1696 = vmatprep.subr.mxu0 %v402
    %1697 = vmatpush1.msra.mxu0 %v401
    %1698 = vmatprep.subr.mxu0 %v406
    %1699 = vmatpush1.msra.mxu0 %v405
    %1700 = vmatprep.subr.mxu0 0.0
    %1701 = vmatpush1.msra.mxu0 0.0
    %1702 = vmatprep.subr.mxu0 0.0
    %1703 = vmatpush1.msra.mxu0 0.0
    %1704 = vmatprep.subr.mxu0 0.0
    %1705 = vmatpush1.msra.mxu0 0.0
    %1706 = vmatprep.subr.mxu0 0.0
    %1707 = vmatpush1.msra.mxu0 0.0
    %1708 = vmatprep.subr.mxu0 0.0
    %1709 = vmatpush1.msra.mxu0 0.0
    %1710 = vmatprep.subr.mxu0 0.0
    %1711 = vmatpush1.msra.mxu0 0.0
    %1712 = vmatprep.subr.mxu0 0.0
    %1713 = vmatpush1.msra.mxu0 0.0
    %1714 = vmatprep.subr.mxu0 0.0
    %1715 = vmatpush1.msra.mxu0 0.0
    %1716 = vmatprep.subr.mxu0 0.0
    %1717 = vmatpush1.msra.mxu0 0.0
    %1718 = vmatprep.subr.mxu0 0.0
    %1719 = vmatpush1.msra.mxu0 0.0
    %1720 = vmatprep.subr.mxu0 0.0
    %1721 = vmatpush1.msra.mxu0 0.0
    %1722 = vmatprep.subr.mxu0 0.0
    %1723 = vmatpush1.msra.mxu0 0.0
    %1724 = vmatprep.subr.mxu0 0.0
    %1725 = vmatpush1.msra.mxu0 0.0
    %1726 = vmatprep.subr.mxu0 0.0
    %1727 = vmatpush1.msra.mxu0 0.0
    %1728 = vmatprep.subr.mxu0 0.0
    %1729 = vmatpush1.msra.mxu0 0.0
    %1730 = vmatprep.subr.mxu0 0.0
    %1731 = vmatpush1.msra.mxu0 0.0
    %1732 = vmatprep.mubr.f32.mxu0 0.0
    %1733 = vmatmul.mubr.f32.gmra.mrb[0].mxu0 %v1596
    %v1734 = vpop.f32.mrb[0].mxu0
    %v1735 = vadd.f32 0.0, %v1734
    %v1736 = vpop.f32.mrb[0].mxu0
    %v1737 = vadd.f32 0.0, %v1736
    %1738 = vdwg.mxu0
    %v1739 = vadd.f32 %v226, %v1664
    %v1740 = vadd.f32 %v228, %v1666
    %v1741 = vadd.f32 %v339, %v1735
    %v1742 = vadd.f32 %v341, %v1737
    %v1743 = vxor.u32 %v1739, 2147483648
    %v1744 = vxor.u32 %v1740, 2147483648
    %v1745 = vxor.u32 %v1741, 2147483648
    %v1746 = vmul.f32 %v1743, 1.442695
    %v1747 = vpow.pop %v1746
    %v1748 = vmul.f32 %v1744, 1.442695
    %v1749 = vpow.pop %v1748
    %v1750 = vmul.f32 %v1745, 1.442695
    %v1751 = vpow.pop %v1750
    %v1752 = vadd.f32 %v1747, 1.0
    %v1753 = vadd.f32 %v1749, 1.0
    %v1754 = vadd.f32 %v1751, 1.0
    %v1755 = vrcp.pop %v1752
    %v1756 = vmul.f32 1.0, %v1755
    %v1757 = vrcp.pop %v1753
    %v1758 = vmul.f32 1.0, %v1757
    %v1759 = vrcp.pop %v1754
    %v1760 = vmul.f32 1.0, %v1759
    %v1761 = vtanh.pop %v1742
    %v1762 = vmul.f32 %v1758, %v1594
    %v1763 = vmul.f32 %v1756, %v1761
    %v1764 = vadd.f32 %v1762, %v1763
    %v1765 = vtanh.pop %v1764
    %v1766 = vmul.f32 %v1760, %v1765
    %v1767 = vld [vmem:[#allocation7] sm:$0xff]
    %v1768 = vld [vmem:[#allocation7 + $0x8] sm:$0xff]
    %v1769 = vld [vmem:[#allocation7 + $0x10] sm:$0xff]
    %v1770 = vld [vmem:[#allocation7 + $0x18] sm:$0xff]
    %v1771 = vld [vmem:[#allocation7 + $0x20] sm:$0xff]
    %v1772 = vld [vmem:[#allocation7 + $0x28] sm:$0xff]
    %v1773 = vld [vmem:[#allocation7 + $0x30] sm:$0xff]
    %v1774 = vld [vmem:[#allocation7 + $0x38] sm:$0xff]
    %v1775 = vld [vmem:[#allocation7 + $0x40] sm:$0xff]
    %v1776 = vld [vmem:[#allocation7 + $0x48] sm:$0xff]
    %v1777 = vld [vmem:[#allocation7 + $0x50] sm:$0xff]
    %v1778 = vld [vmem:[#allocation7 + $0x58] sm:$0xff]
    %v1779 = vld [vmem:[#allocation7 + $0x60] sm:$0xff]
    %v1780 = vld [vmem:[#allocation7 + $0x68] sm:$0xff]
    %v1781 = vld [vmem:[#allocation7 + $0x70] sm:$0xff]
    %v1782 = vld [vmem:[#allocation7 + $0x78] sm:$0xff]
    %v1783 = vld [vmem:[#allocation7 + $0x80] sm:$0xff]
    %v1784 = vld [vmem:[#allocation7 + $0x88] sm:$0xff]
    %v1785 = vld [vmem:[#allocation7 + $0x90] sm:$0xff]
    %v1786 = vld [vmem:[#allocation7 + $0x98] sm:$0xff]
    %v1787 = vld [vmem:[#allocation7 + $0xa0] sm:$0xff]
    %v1788 = vld [vmem:[#allocation7 + $0xa8] sm:$0xff]
    %v1789 = vld [vmem:[#allocation7 + $0xb0] sm:$0xff]
    %v1790 = vld [vmem:[#allocation7 + $0xb8] sm:$0xff]
    %v1791 = vld [vmem:[#allocation7 + $0xc0] sm:$0xff]
    %v1792 = vld [vmem:[#allocation7 + $0xc8] sm:$0xff]
    %v1793 = vld [vmem:[#allocation7 + $0xd0] sm:$0xff]
    %v1794 = vld [vmem:[#allocation7 + $0xd8] sm:$0xff]
    %v1795 = vld [vmem:[#allocation7 + $0xe0] sm:$0xff]
    %v1796 = vld [vmem:[#allocation7 + $0xe8] sm:$0xff]
    %v1797 = vld [vmem:[#allocation7 + $0xf0] sm:$0xff]
    %v1798 = vld [vmem:[#allocation7 + $0xf8] sm:$0xff]
    %v1799 = vld [vmem:[#allocation7 + $0x100] sm:$0x1]
    %v1800 = vld [vmem:[#allocation7 + $0x108] sm:$0x1]
    %v1801 = vlaneseq
    %v1802 = vshrl.u32 %v1801, 7
    %v1803 = vsub.s32 0, %v1802
    %v1804 = vrot.slane %v1799, %v1803
    %1805 = vmatprep.subr.mxu0 0.0
    %1806 = vmatpush1.msra.mxu0 %v1767
    %1807 = vmatprep.subr.mxu0 0.0
    %1808 = vmatpush1.msra.mxu0 %v1768
    %1809 = vmatprep.subr.mxu0 0.0
    %1810 = vmatpush1.msra.mxu0 %v1769
    %1811 = vmatprep.subr.mxu0 0.0
    %1812 = vmatpush1.msra.mxu0 %v1770
    %1813 = vmatprep.subr.mxu0 0.0
    %1814 = vmatpush1.msra.mxu0 %v1771
    %1815 = vmatprep.subr.mxu0 0.0
    %1816 = vmatpush1.msra.mxu0 %v1772
    %1817 = vmatprep.subr.mxu0 0.0
    %1818 = vmatpush1.msra.mxu0 %v1773
    %1819 = vmatprep.subr.mxu0 0.0
    %1820 = vmatpush1.msra.mxu0 %v1774
    %1821 = vmatprep.subr.mxu0 0.0
    %1822 = vmatpush1.msra.mxu0 %v1775
    %1823 = vmatprep.subr.mxu0 0.0
    %1824 = vmatpush1.msra.mxu0 %v1776
    %1825 = vmatprep.subr.mxu0 0.0
    %1826 = vmatpush1.msra.mxu0 %v1777
    %1827 = vmatprep.subr.mxu0 0.0
    %1828 = vmatpush1.msra.mxu0 %v1778
    %1829 = vmatprep.subr.mxu0 0.0
    %1830 = vmatpush1.msra.mxu0 %v1779
    %1831 = vmatprep.subr.mxu0 0.0
    %1832 = vmatpush1.msra.mxu0 %v1780
    %1833 = vmatprep.subr.mxu0 0.0
    %1834 = vmatpush1.msra.mxu0 %v1781
    %1835 = vmatprep.subr.mxu0 0.0
    %1836 = vmatpush1.msra.mxu0 %v1782
    %1837 = vmatprep.subr.mxu0 0.0
    %1838 = vmatpush1.msra.mxu0 0.0
    %1839 = vmatprep.subr.mxu0 0.0
    %1840 = vmatpush1.msra.mxu0 0.0
    %1841 = vmatprep.subr.mxu0 0.0
    %1842 = vmatpush1.msra.mxu0 0.0
    %1843 = vmatprep.subr.mxu0 0.0
    %1844 = vmatpush1.msra.mxu0 0.0
    %1845 = vmatprep.subr.mxu0 0.0
    %1846 = vmatpush1.msra.mxu0 0.0
    %1847 = vmatprep.subr.mxu0 0.0
    %1848 = vmatpush1.msra.mxu0 0.0
    %1849 = vmatprep.subr.mxu0 0.0
    %1850 = vmatpush1.msra.mxu0 0.0
    %1851 = vmatprep.subr.mxu0 0.0
    %1852 = vmatpush1.msra.mxu0 0.0
    %1853 = vmatprep.subr.mxu0 0.0
    %1854 = vmatpush1.msra.mxu0 0.0
    %1855 = vmatprep.subr.mxu0 0.0
    %1856 = vmatpush1.msra.mxu0 0.0
    %1857 = vmatprep.subr.mxu0 0.0
    %1858 = vmatpush1.msra.mxu0 0.0
    %1859 = vmatprep.subr.mxu0 0.0
    %1860 = vmatpush1.msra.mxu0 0.0
    %1861 = vmatprep.subr.mxu0 0.0
    %1862 = vmatpush1.msra.mxu0 0.0
    %1863 = vmatprep.subr.mxu0 0.0
    %1864 = vmatpush1.msra.mxu0 0.0
    %1865 = vmatprep.subr.mxu0 0.0
    %1866 = vmatpush1.msra.mxu0 0.0
    %1867 = vmatprep.subr.mxu0 0.0
    %1868 = vmatpush1.msra.mxu0 0.0
    %1869 = vmatprep.mubr.f32.mxu0 0.0
    %1870 = vmatmul.mubr.f32.gmra.mrb[0].mxu0 %v1766
    %v1871 = vpop.f32.mrb[0].mxu0
    %v1872 = vadd.f32 %v1804, %v1871
    %v1873 = vpop.f32.mrb[0].mxu0
    %1874 = vdwg.mxu0
    %v1875 = vmax.f32 %v1872, 0.0
    %v1876 = vlaneseq
    %v1877 = vshrl.u32 %v1876, 7
    %v1878 = vsub.s32 0, %v1877
    %v1879 = vrot.slane %v1800, %v1878
    %1880 = vmatprep.subr.mxu0 0.0
    %1881 = vmatpush1.msra.mxu0 %v1783
    %1882 = vmatprep.subr.mxu0 0.0
    %1883 = vmatpush1.msra.mxu0 %v1784
    %1884 = vmatprep.subr.mxu0 0.0
    %1885 = vmatpush1.msra.mxu0 %v1785
    %1886 = vmatprep.subr.mxu0 0.0
    %1887 = vmatpush1.msra.mxu0 %v1786
    %1888 = vmatprep.subr.mxu0 0.0
    %1889 = vmatpush1.msra.mxu0 %v1787
    %1890 = vmatprep.subr.mxu0 0.0
    %1891 = vmatpush1.msra.mxu0 %v1788
    %1892 = vmatprep.subr.mxu0 0.0
    %1893 = vmatpush1.msra.mxu0 %v1789
    %1894 = vmatprep.subr.mxu0 0.0
    %1895 = vmatpush1.msra.mxu0 %v1790
    %1896 = vmatprep.subr.mxu0 0.0
    %1897 = vmatpush1.msra.mxu0 %v1791
    %1898 = vmatprep.subr.mxu0 0.0
    %1899 = vmatpush1.msra.mxu0 %v1792
    %1900 = vmatprep.subr.mxu0 0.0
    %1901 = vmatpush1.msra.mxu0 %v1793
    %1902 = vmatprep.subr.mxu0 0.0
    %1903 = vmatpush1.msra.mxu0 %v1794
    %1904 = vmatprep.subr.mxu0 0.0
    %1905 = vmatpush1.msra.mxu0 %v1795
    %1906 = vmatprep.subr.mxu0 0.0
    %1907 = vmatpush1.msra.mxu0 %v1796
    %1908 = vmatprep.subr.mxu0 0.0
    %1909 = vmatpush1.msra.mxu0 %v1797
    %1910 = vmatprep.subr.mxu0 0.0
    %1911 = vmatpush1.msra.mxu0 %v1798
    %1912 = vmatprep.subr.mxu0 0.0
    %1913 = vmatpush1.msra.mxu0 0.0
    %1914 = vmatprep.subr.mxu0 0.0
    %1915 = vmatpush1.msra.mxu0 0.0
    %1916 = vmatprep.subr.mxu0 0.0
    %1917 = vmatpush1.msra.mxu0 0.0
    %1918 = vmatprep.subr.mxu0 0.0
    %1919 = vmatpush1.msra.mxu0 0.0
    %1920 = vmatprep.subr.mxu0 0.0
    %1921 = vmatpush1.msra.mxu0 0.0
    %1922 = vmatprep.subr.mxu0 0.0
    %1923 = vmatpush1.msra.mxu0 0.0
    %1924 = vmatprep.subr.mxu0 0.0
    %1925 = vmatpush1.msra.mxu0 0.0
    %1926 = vmatprep.subr.mxu0 0.0
    %1927 = vmatpush1.msra.mxu0 0.0
    %1928 = vmatprep.subr.mxu0 0.0
    %1929 = vmatpush1.msra.mxu0 0.0
    %1930 = vmatprep.subr.mxu0 0.0
    %1931 = vmatpush1.msra.mxu0 0.0
    %1932 = vmatprep.subr.mxu0 0.0
    %1933 = vmatpush1.msra.mxu0 0.0
    %1934 = vmatprep.subr.mxu0 0.0
    %1935 = vmatpush1.msra.mxu0 0.0
    %1936 = vmatprep.subr.mxu0 0.0
    %1937 = vmatpush1.msra.mxu0 0.0
    %1938 = vmatprep.subr.mxu0 0.0
    %1939 = vmatpush1.msra.mxu0 0.0
    %1940 = vmatprep.subr.mxu0 0.0
    %1941 = vmatpush1.msra.mxu0 0.0
    %1942 = vmatprep.subr.mxu0 0.0
    %1943 = vmatpush1.msra.mxu0 0.0
    %1944 = vmatprep.mubr.f32.mxu0 0.0
    %1945 = vmatmul.mubr.f32.gmra.mrb[0].mxu0 %v1875
    %v1946 = vpop.f32.mrb[0].mxu0
    %v1947 = vadd.f32 %v1879, %v1946
    %v1948 = vpop.f32.mrb[0].mxu0
    %1949 = vdwg.mxu0
    %1950 = vst [vmem:[#allocation8] sm:$0xff] %v1947
    // Predicated region
    $region30: #{tpu_custom_call.1} parent=1 // pred_check
      _
    $region31: #{tpu_custom_call.1} parent=1 // pred_check_branch
      %1952 = sbr.rel (0) target = $region33
    $region32: #{tpu_custom_call.1} parent=1 // pred_region
      %s1954 = ssub.s32 128, 128
      %1955 = vsyncadd [#allocation4], %s1954
      %s1957 = sshll.u32 [#allocation8], 4
      %s1958 = int_to_ptr.vmem [resolvable:$true] %s1957
      %1960 = dma.vmem_to_hbm [thread:$0]  %s1958, 128, %s4, [#allocation4]
    $region33: #{tpu_custom_call.1} parent=1 // pred_fallthru
      _
    // Predicated region
    $region34: #{tpu_custom_call.1} parent=1 // pred_check
      _
    $region35: #{tpu_custom_call.1} parent=1 // pred_check_branch
      %1962 = sbr.rel (0) target = $region37
    $region36: #{tpu_custom_call.1} parent=1 // pred_region
      %1963 = dma.done [#allocation4], 128
    $region37: #{tpu_custom_call.1} parent=1 // pred_fallthru
      _
    %1964 = vsyncpa [#allocation3], 1
    %1965 = vsyncpa [#allocation6], 1
    %1966 = vsyncpa [#allocation4], 1

</llo_original>
